<compile_context>
chip_gen: v7x
topology: tpu7x:2x2x1
jax: 0.10.0
libtpu: 0.0.40
codegen_flags: <defaults>
</compile_context>

<pallas_src>
import math

import jax
import jax.numpy as jnp
from jax import lax
from jax.experimental import pallas as pl
from jax.experimental.pallas import tpu as pltpu


# ---------------- model config (small, consistent with the module) ----------------
B = 2        # batch
S = 8        # sequence length
D = 32       # d_model
H = 4        # heads
DK = D // H  # d_k
FF = 64      # feedforward hidden size
EPS = 1e-6

# ---------------- packed-parameter layout ----------------
LW = 128                 # lane width; every packed block is zero-padded to 128 lanes
R_WQKV = 0               # rows [0, D)       : [wq | wk | wv] (LN1 affine + 1/sqrt(dk) folded)
R_WO = D                 # rows [D, 2D)      : wo               (D x D,  lane-padded)
R_W1 = 2 * D             # rows [2D, 3D)     : w1               (LN2 affine folded, D x FF padded)
R_W2 = 3 * D             # rows [3D, 3D+LW)  : w2               (FF x D, padded to LW x LW)
W2K = LW
N_WROWS = 3 * D + W2K    # 224

# rows of the (8, 128) bias slab (LN affines are folded away; rows 4..7 unused/zero)
P_BQKV, P_BO, P_B1, P_B2 = range(4)
N_PROWS = 8


def _ln_normalize(v):
    # Scale-free LayerNorm: mean over last dim, *unbiased* (N-1) variance
    # (matches torch .var(dim=-1) used by the module's LayerNormalization).
    mean = jnp.mean(v, axis=-1, keepdims=True)
    cent = v - mean
    var = jnp.sum(cent * cent, axis=-1, keepdims=True) * (1.0 / (v.shape[-1] - 1))
    return cent * lax.rsqrt(var + EPS)


def encoder_block_kernel(x_ref, bias_ref, w_ref, p_ref, o_ref):
    x = x_ref[0]          # (M, 128)  lanes D:128 are zero (padded in wrapper)
    bias = bias_ref[0]    # (M, M)    additive attention bias (0 / -1e9 / -1e30)
    M = x.shape[0]

    def prow(r):          # one packed parameter row, shape (1, 128)
        return p_ref[r:r + 1, :]

    # ---------------- residual connection 0: pre-LN self attention ----------------
    xn = _ln_normalize(x[:, :D])                                       # (M, D)

    # Fused Q/K/V projection (LN1 affine + softmax scale folded into the slab).
    qkv = jnp.dot(xn, w_ref[R_WQKV:R_WQKV + D, :],
                  preferred_element_type=jnp.float32) + prow(P_BQKV)   # (M, 128)

    heads = []
    for h in range(H):    # static unroll over heads
        q_h = qkv[:, h * DK:(h + 1) * DK]                 # (M, DK)
        k_h = qkv[:, D + h * DK:D + (h + 1) * DK]         # (M, DK)
        v_h = qkv[:, 2 * D + h * DK:2 * D + (h + 1) * DK] # (M, DK)

        # q_h @ k_h^T with the transpose folded into the MXU issue (scale pre-folded).
        scores = lax.dot_general(q_h, k_h, (((1,), (1,)), ((), ())),
                                 preferred_element_type=jnp.float32) + bias   # (M, M)
        m = jnp.max(scores, axis=-1, keepdims=True)
        e = jnp.exp(scores - m)
        # Normalize AFTER the PV matmul: (M, DK) multiply instead of (M, M).
        inv = pl.reciprocal(jnp.sum(e, axis=-1, keepdims=True), approx=True)
        heads.append(jnp.dot(e, v_h, preferred_element_type=jnp.float32) * inv)

    # One lane-concat + ONE W_o matmul instead of 4 tiny-K matmuls + accumulates.
    heads_cat = jnp.concatenate(heads, axis=-1)                        # (M, D)
    attn = jnp.dot(heads_cat, w_ref[R_WO:R_WO + D, :],
                   preferred_element_type=jnp.float32) + prow(P_BO)    # (M, 128)

    x1 = x + attn                                                      # lanes D: stay 0

    # ---------------- residual connection 1: pre-LN feedforward ----------------
    x1n = _ln_normalize(x1[:, :D])                                     # (M, D)
    h1 = jnp.dot(x1n, w_ref[R_W1:R_W1 + D, :],
                 preferred_element_type=jnp.float32) + prow(P_B1)      # (M, 128)
    h1 = jnp.maximum(h1, 0.0)
    ff = jnp.dot(h1, w_ref[R_W2:R_W2 + W2K, :],
                 preferred_element_type=jnp.float32) + prow(P_B2)      # (M, 128)

    # Full 128-lane store (pad lanes are exactly zero); wrapper slices [..., :D].
    o_ref[0] = x1 + ff


# ---------------- wrapper-side parameter / mask packing ----------------
def _pack_params(params):
    (a1, g1, wq, bq, wk, bk, wv, bv, wo, bo, a2, g2, w1, b1, w2, b2) = params
    f32 = jnp.float32
    scale = 1.0 / math.sqrt(DK)

    a1c = jnp.asarray(a1, f32).reshape(D, 1)     # row-scales for W_qkv
    g1r = jnp.asarray(g1, f32).reshape(1, D)
    a2c = jnp.asarray(a2, f32).reshape(D, 1)     # row-scales for W1
    g2r = jnp.asarray(g2, f32).reshape(1, D)

    # Fold LN1 affine into the QKV projection; fold 1/sqrt(dk) into the Q half.
    wq_f = (a1c * jnp.asarray(wq, f32)) * scale
    bq_f = (g1r @ jnp.asarray(wq, f32) + jnp.asarray(bq, f32)) * scale
    wk_f = a1c * jnp.asarray(wk, f32)
    bk_f = g1r @ jnp.asarray(wk, f32) + jnp.asarray(bk, f32)
    wv_f = a1c * jnp.asarray(wv, f32)
    bv_f = g1r @ jnp.asarray(wv, f32) + jnp.asarray(bv, f32)

    # Fold LN2 affine into the first FFN linear.
    w1_f = a2c * jnp.asarray(w1, f32)
    b1_f = g2r @ jnp.asarray(w1, f32) + jnp.asarray(b1, f32)

    def padlane(v):
        v = jnp.asarray(v, f32).reshape(1, -1)
        return jnp.pad(v, ((0, 0), (0, LW - v.shape[-1])))

    def padw(w, rows):
        w = jnp.asarray(w, f32)
        return jnp.pad(w, ((0, rows - w.shape[0]), (0, LW - w.shape[1])))

    bqkv = jnp.concatenate([bq_f, bk_f, bv_f], axis=-1)                # (1, 3D)
    pvec = jnp.concatenate(
        [padlane(bqkv), padlane(bo), padlane(b1_f), padlane(b2),
         jnp.zeros((N_PROWS - 4, LW), f32)], axis=0)                   # (8, 128)

    wqkv = jnp.concatenate([wq_f, wk_f, wv_f], axis=-1)                # (D, 3D)
    wslab = jnp.concatenate(
        [padw(wqkv, D), padw(wo, D), padw(w1_f, D), padw(w2, W2K)], axis=0)  # (224, 128)
    return wslab, pvec


def _attention_bias(mask, fold_batch):
    # Additive bias: 0 keep, -1e9 user-masked (matches masked_fill_(-1e9)); when the
    # batch is folded into one block, cross-batch entries get -1e30 so they always
    # contribute exactly zero probability.  Score path stays f32.
    keep_bias = jnp.where(mask == 0, -1e9, 0.0).astype(jnp.float32)   # (B, S, S)
    if not fold_batch:
        return keep_bias
    bias = jnp.full((B * S, B * S), -1e30, jnp.float32)
    for b in range(B):
        bias = bias.at[b * S:(b + 1) * S, b * S:(b + 1) * S].set(keep_bias[b])
    return bias[None]                                                 # (1, B*S, B*S)


def _should_fold_batch():
    # v7x has 2 TensorCores/chip: keep the 2-wide "parallel" batch grid (one batch
    # element per core).  Single-TC v5e/v6e: fold the batch into one invocation
    # (per-grid-step overhead is comparable to the whole compute at these sizes).
    # TODO(synk): on v7x, measure folded vs 2-wide grid and keep the faster one.
    try:
        kind = jax.devices()[0].device_kind.lower()
    except Exception:
        return True
    return not ("v7" in kind or "7x" in kind)


def encoder_block(x, mask, params, *, fold_batch=True):
    """x: (B, S, D) f32; mask: (B, S, S) f32 (0 => masked)."""
    wslab, pvec = _pack_params(params)
    bias = _attention_bias(mask, fold_batch)

    if fold_batch:
        xx = x.reshape(1, B * S, D)
        nblk, M = 1, B * S
    else:
        xx = x
        nblk, M = B, S

    # Lane-dense activations: zero-pad D=32 -> 128 lanes once in the wrapper.
    xx = jnp.pad(xx, ((0, 0), (0, 0), (0, LW - D)))

    full = lambda shape: pl.BlockSpec(shape, lambda b: (0,) * len(shape))
    out = pl.pallas_call(
        encoder_block_kernel,
        out_shape=jax.ShapeDtypeStruct((nblk, M, LW), jnp.float32),
        grid_spec=pltpu.PrefetchScalarGridSpec(
            num_scalar_prefetch=0,
            grid=(nblk,),
            in_specs=[
                pl.BlockSpec((1, M, LW), lambda b: (b, 0, 0)),  # x (lane-padded)
                pl.BlockSpec((1, M, M), lambda b: (b, 0, 0)),   # attention bias
                full((N_WROWS, LW)),                            # packed weights
                full((N_PROWS, LW)),                            # packed biases
            ],
            out_specs=pl.BlockSpec((1, M, LW), lambda b: (b, 0, 0)),
        ),
        compiler_params=pltpu.CompilerParams(dimension_semantics=("parallel",)),
    )(xx, bias, wslab, pvec)
    return out[:, :, :D].reshape(B, S, D)


# ---------------- pure-JAX reference for verification ----------------
def reference(x, mask, params):
    (a1, g1, wq, bq, wk, bk, wv, bv, wo, bo, a2, g2, w1, b1, w2, b2) = params

    def ln(v, alpha, beta):
        mean = jnp.mean(v, axis=-1, keepdims=True)
        var = jnp.sum((v - mean) ** 2, axis=-1, keepdims=True) / (v.shape[-1] - 1)
        return alpha * ((v - mean) / jnp.sqrt(var + EPS)) + beta

    xn = ln(x, a1, g1)
    q = xn @ wq + bq
    k = xn @ wk + bk
    v = xn @ wv + bv
    q = q.reshape(B, S, H, DK).transpose(0, 2, 1, 3)
    k = k.reshape(B, S, H, DK).transpose(0, 2, 1, 3)
    v = v.reshape(B, S, H, DK).transpose(0, 2, 1, 3)
    scores = jnp.einsum("bhqd,bhkd->bhqk", q, k) / math.sqrt(DK)
    scores = jnp.where(mask[:, None, :, :] == 0, -1e9, scores)
    p = jax.nn.softmax(scores, axis=-1)
    attn = jnp.einsum("bhqk,bhkd->bhqd", p, v).transpose(0, 2, 1, 3).reshape(B, S, D)
    x1 = x + (attn @ wo + bo)
    x1n = ln(x1, a2, g2)
    ff = jnp.maximum(x1n @ w1 + b1, 0.0) @ w2 + b2
    return x1 + ff


if __name__ == "__main__":
    key = jax.random.PRNGKey(0)
    keys = jax.random.split(key, 18)

    x = jax.random.normal(keys[0], (B, S, D), dtype=jnp.float32)
    # mask: 1 = keep, 0 = masked (mask out last key position for batch element 1)
    mask = jnp.ones((B, S, S), dtype=jnp.float32)
    mask = mask.at[1, :, -1].set(0.0)

    def lin(kk, fan_in, shape):
        return jax.random.uniform(kk, shape, jnp.float32,
                                  -1.0 / math.sqrt(fan_in), 1.0 / math.sqrt(fan_in))

    # Linear weights stored pre-transposed so the kernel does (x @ W).
    wq = lin(keys[1], D, (D, D)); bq = lin(keys[2], D, (1, D))
    wk = lin(keys[3], D, (D, D)); bk = lin(keys[4], D, (1, D))
    wv = lin(keys[5], D, (D, D)); bv = lin(keys[6], D, (1, D))
    wo = lin(keys[7], D, (D, D)); bo = lin(keys[8], D, (1, D))
    w1 = lin(keys[9], D, (D, FF)); b1 = lin(keys[10], D, (1, FF))
    w2 = lin(keys[11], FF, (FF, D)); b2 = jnp.zeros((1, D), jnp.float32)
    # Non-trivial LayerNorm affines so the offline affine-fold path is exercised.
    a1 = 1.0 + 0.1 * jax.random.normal(keys[12], (1, D), jnp.float32)
    g1 = 0.1 * jax.random.normal(keys[13], (1, D), jnp.float32)
    a2 = 1.0 + 0.1 * jax.random.normal(keys[14], (1, D), jnp.float32)
    g2 = 0.1 * jax.random.normal(keys[15], (1, D), jnp.float32)

    params = (a1, g1, wq, bq, wk, bk, wv, bv, wo, bo, a2, g2, w1, b1, w2, b2)

    ref = reference(x, mask, params)

    # Chip-appropriate batching strategy (folded on v5e/v6e, 2-wide grid on v7x).
    fold = _should_fold_batch()
    out = jax.block_until_ready(encoder_block(x, mask, params, fold_batch=fold))
    assert out.shape == (B, S, D)
    assert jnp.allclose(out, ref, atol=1e-3, rtol=1e-3), \
        f"max abs err {jnp.max(jnp.abs(out - ref))}"

    # Also verify the alternate batching strategy (covers both code paths).
    out2 = jax.block_until_ready(encoder_block(x, mask, params, fold_batch=not fold))
    assert jnp.allclose(out2, ref, atol=1e-3, rtol=1e-3), \
        f"max abs err (alt path) {jnp.max(jnp.abs(out2 - ref))}"

    print("KERNEL_OK")
</pallas_src>

<mosaic_0001>
module attributes {stable_mosaic.version = 11 : i64} {
  func.func @encoder_block_kernel(%arg0: i32, %arg1: memref<1x16x128xf32, #tpu.memory_space<vmem>>, %arg2: memref<1x16x16xf32, #tpu.memory_space<vmem>>, %arg3: memref<224x128xf32, #tpu.memory_space<vmem>>, %arg4: memref<8x128xf32, #tpu.memory_space<vmem>>, %arg5: memref<1x16x128xf32, #tpu.memory_space<vmem>>) attributes {dimension_semantics = [#tpu.dimension_semantics<parallel>], iteration_bounds = array<i64: 1>, scalar_prefetch = 0 : i64, scratch_operands = 0 : i64, tpu.core_type = #tpu.core_type<tc>, window_params = [{transform_indices = @transform_0, window_bounds = array<i64: 1, 16, 128>}, {transform_indices = @transform_1, window_bounds = array<i64: 1, 16, 16>}, {pipeline_mode = #tpu.pipeline_mode<synchronous>, transform_indices = @transform_2, window_bounds = array<i64: 224, 128>}, {pipeline_mode = #tpu.pipeline_mode<synchronous>, transform_indices = @transform_3, window_bounds = array<i64: 8, 128>}, {transform_indices = @transform_4, window_bounds = array<i64: 1, 16, 128>}]} {
    %c0 = arith.constant 0 : index
    %c0_0 = arith.constant 0 : index
    %c0_1 = arith.constant 0 : index
    %0 = vector.load %arg1[%c0, %c0_0, %c0_1] : memref<1x16x128xf32, #tpu.memory_space<vmem>>, vector<1x16x128xf32>
    %1 = vector.shape_cast %0 : vector<1x16x128xf32> to vector<16x128xf32>
    %c0_2 = arith.constant 0 : index
    %c0_3 = arith.constant 0 : index
    %c0_4 = arith.constant 0 : index
    %2 = vector.load %arg2[%c0_2, %c0_3, %c0_4] : memref<1x16x16xf32, #tpu.memory_space<vmem>>, vector<1x16x16xf32>
    %3 = vector.shape_cast %2 : vector<1x16x16xf32> to vector<16x16xf32>
    %4 = vector.extract_strided_slice %1 {offsets = [0, 0], sizes = [16, 32], strides = [1, 1]} : vector<16x128xf32> to vector<16x32xf32>
    %cst = arith.constant dense<0.000000e+00> : vector<16xf32>
    %5 = vector.multi_reduction <add>, %4, %cst [1] : vector<16x32xf32> to vector<16xf32>
    %6 = vector.shape_cast %5 : vector<16xf32> to vector<16x1xf32>
    %cst_5 = arith.constant 3.200000e+01 : f32
    %7 = vector.broadcast %cst_5 : f32 to vector<16x1xf32>
    %8 = arith.divf %6, %7 : vector<16x1xf32>
    %9 = vector.broadcast %8 : vector<16x1xf32> to vector<16x32xf32>
    %10 = arith.subf %4, %9 : vector<16x32xf32>
    %11 = arith.mulf %10, %10 : vector<16x32xf32>
    %cst_6 = arith.constant dense<0.000000e+00> : vector<16xf32>
    %12 = vector.multi_reduction <add>, %11, %cst_6 [1] : vector<16x32xf32> to vector<16xf32>
    %13 = vector.shape_cast %12 : vector<16xf32> to vector<16x1xf32>
    %cst_7 = arith.constant 0.0322580636 : f32
    %14 = vector.broadcast %cst_7 : f32 to vector<16x1xf32>
    %15 = arith.mulf %13, %14 : vector<16x1xf32>
    %cst_8 = arith.constant 9.99999997E-7 : f32
    %16 = vector.broadcast %cst_8 : f32 to vector<16x1xf32>
    %17 = arith.addf %15, %16 : vector<16x1xf32>
    %18 = math.rsqrt %17 : vector<16x1xf32>
    %19 = vector.broadcast %18 : vector<16x1xf32> to vector<16x32xf32>
    %20 = arith.mulf %10, %19 : vector<16x32xf32>
    %c0_9 = arith.constant 0 : index
    %c0_10 = arith.constant 0 : index
    %21 = vector.load %arg3[%c0_9, %c0_10] : memref<224x128xf32, #tpu.memory_space<vmem>>, vector<32x128xf32>
    %cst_11 = arith.constant dense<0.000000e+00> : vector<16x128xf32>
    %22 = tpu.matmul %20, %21, %cst_11 {dimension_numbers = #tpu.dot_dimension_numbers<[1], [0], [0], [1], [0, 0, 1, 1], [], []>} : vector<16x32xf32>, vector<32x128xf32>, vector<16x128xf32> -> vector<16x128xf32>
    %c0_12 = arith.constant 0 : index
    %c0_13 = arith.constant 0 : index
    %23 = vector.load %arg4[%c0_12, %c0_13] : memref<8x128xf32, #tpu.memory_space<vmem>>, vector<1x128xf32>
    %24 = vector.broadcast %23 : vector<1x128xf32> to vector<16x128xf32>
    %25 = arith.addf %22, %24 : vector<16x128xf32>
    %26 = vector.extract_strided_slice %25 {offsets = [0, 0], sizes = [16, 8], strides = [1, 1]} : vector<16x128xf32> to vector<16x8xf32>
    %27 = vector.extract_strided_slice %25 {offsets = [0, 32], sizes = [16, 8], strides = [1, 1]} : vector<16x128xf32> to vector<16x8xf32>
    %28 = vector.extract_strided_slice %25 {offsets = [0, 64], sizes = [16, 8], strides = [1, 1]} : vector<16x128xf32> to vector<16x8xf32>
    %cst_14 = arith.constant dense<0.000000e+00> : vector<16x16xf32>
    %29 = tpu.matmul %26, %27, %cst_14 {dimension_numbers = #tpu.dot_dimension_numbers<[1], [1], [0], [0], [0, 0, 1, 0], [], []>} : vector<16x8xf32>, vector<16x8xf32>, vector<16x16xf32> -> vector<16x16xf32>
    %30 = arith.addf %29, %3 : vector<16x16xf32>
    %cst_15 = arith.constant dense<0xFF800000> : vector<16xf32>
    %31 = vector.multi_reduction <maximumf>, %30, %cst_15 [1] : vector<16x16xf32> to vector<16xf32>
    %32 = vector.shape_cast %31 : vector<16xf32> to vector<16x1xf32>
    %33 = vector.broadcast %32 : vector<16x1xf32> to vector<16x16xf32>
    %34 = arith.subf %30, %33 : vector<16x16xf32>
    %35 = math.exp %34 : vector<16x16xf32>
    %cst_16 = arith.constant dense<0.000000e+00> : vector<16xf32>
    %36 = vector.multi_reduction <add>, %35, %cst_16 [1] : vector<16x16xf32> to vector<16xf32>
    %37 = vector.shape_cast %36 : vector<16xf32> to vector<16x1xf32>
    %38 = tpu.reciprocal %37 {approx = true} : vector<16x1xf32> -> vector<16x1xf32>
    %cst_17 = arith.constant dense<0.000000e+00> : vector<16x8xf32>
    %39 = tpu.matmul %35, %28, %cst_17 {dimension_numbers = #tpu.dot_dimension_numbers<[1], [0], [0], [1], [0, 0, 1, 1], [], []>} : vector<16x16xf32>, vector<16x8xf32>, vector<16x8xf32> -> vector<16x8xf32>
    %40 = vector.broadcast %38 : vector<16x1xf32> to vector<16x8xf32>
    %41 = arith.mulf %39, %40 : vector<16x8xf32>
    %42 = vector.extract_strided_slice %25 {offsets = [0, 8], sizes = [16, 8], strides = [1, 1]} : vector<16x128xf32> to vector<16x8xf32>
    %43 = vector.extract_strided_slice %25 {offsets = [0, 40], sizes = [16, 8], strides = [1, 1]} : vector<16x128xf32> to vector<16x8xf32>
    %44 = vector.extract_strided_slice %25 {offsets = [0, 72], sizes = [16, 8], strides = [1, 1]} : vector<16x128xf32> to vector<16x8xf32>
    %cst_18 = arith.constant dense<0.000000e+00> : vector<16x16xf32>
    %45 = tpu.matmul %42, %43, %cst_18 {dimension_numbers = #tpu.dot_dimension_numbers<[1], [1], [0], [0], [0, 0, 1, 0], [], []>} : vector<16x8xf32>, vector<16x8xf32>, vector<16x16xf32> -> vector<16x16xf32>
    %46 = arith.addf %45, %3 : vector<16x16xf32>
    %cst_19 = arith.constant dense<0xFF800000> : vector<16xf32>
    %47 = vector.multi_reduction <maximumf>, %46, %cst_19 [1] : vector<16x16xf32> to vector<16xf32>
    %48 = vector.shape_cast %47 : vector<16xf32> to vector<16x1xf32>
    %49 = vector.broadcast %48 : vector<16x1xf32> to vector<16x16xf32>
    %50 = arith.subf %46, %49 : vector<16x16xf32>
    %51 = math.exp %50 : vector<16x16xf32>
    %cst_20 = arith.constant dense<0.000000e+00> : vector<16xf32>
    %52 = vector.multi_reduction <add>, %51, %cst_20 [1] : vector<16x16xf32> to vector<16xf32>
    %53 = vector.shape_cast %52 : vector<16xf32> to vector<16x1xf32>
    %54 = tpu.reciprocal %53 {approx = true} : vector<16x1xf32> -> vector<16x1xf32>
    %cst_21 = arith.constant dense<0.000000e+00> : vector<16x8xf32>
    %55 = tpu.matmul %51, %44, %cst_21 {dimension_numbers = #tpu.dot_dimension_numbers<[1], [0], [0], [1], [0, 0, 1, 1], [], []>} : vector<16x16xf32>, vector<16x8xf32>, vector<16x8xf32> -> vector<16x8xf32>
    %56 = vector.broadcast %54 : vector<16x1xf32> to vector<16x8xf32>
    %57 = arith.mulf %55, %56 : vector<16x8xf32>
    %58 = vector.extract_strided_slice %25 {offsets = [0, 16], sizes = [16, 8], strides = [1, 1]} : vector<16x128xf32> to vector<16x8xf32>
    %59 = vector.extract_strided_slice %25 {offsets = [0, 48], sizes = [16, 8], strides = [1, 1]} : vector<16x128xf32> to vector<16x8xf32>
    %60 = vector.extract_strided_slice %25 {offsets = [0, 80], sizes = [16, 8], strides = [1, 1]} : vector<16x128xf32> to vector<16x8xf32>
    %cst_22 = arith.constant dense<0.000000e+00> : vector<16x16xf32>
    %61 = tpu.matmul %58, %59, %cst_22 {dimension_numbers = #tpu.dot_dimension_numbers<[1], [1], [0], [0], [0, 0, 1, 0], [], []>} : vector<16x8xf32>, vector<16x8xf32>, vector<16x16xf32> -> vector<16x16xf32>
    %62 = arith.addf %61, %3 : vector<16x16xf32>
    %cst_23 = arith.constant dense<0xFF800000> : vector<16xf32>
    %63 = vector.multi_reduction <maximumf>, %62, %cst_23 [1] : vector<16x16xf32> to vector<16xf32>
    %64 = vector.shape_cast %63 : vector<16xf32> to vector<16x1xf32>
    %65 = vector.broadcast %64 : vector<16x1xf32> to vector<16x16xf32>
    %66 = arith.subf %62, %65 : vector<16x16xf32>
    %67 = math.exp %66 : vector<16x16xf32>
    %cst_24 = arith.constant dense<0.000000e+00> : vector<16xf32>
    %68 = vector.multi_reduction <add>, %67, %cst_24 [1] : vector<16x16xf32> to vector<16xf32>
    %69 = vector.shape_cast %68 : vector<16xf32> to vector<16x1xf32>
    %70 = tpu.reciprocal %69 {approx = true} : vector<16x1xf32> -> vector<16x1xf32>
    %cst_25 = arith.constant dense<0.000000e+00> : vector<16x8xf32>
    %71 = tpu.matmul %67, %60, %cst_25 {dimension_numbers = #tpu.dot_dimension_numbers<[1], [0], [0], [1], [0, 0, 1, 1], [], []>} : vector<16x16xf32>, vector<16x8xf32>, vector<16x8xf32> -> vector<16x8xf32>
    %72 = vector.broadcast %70 : vector<16x1xf32> to vector<16x8xf32>
    %73 = arith.mulf %71, %72 : vector<16x8xf32>
    %74 = vector.extract_strided_slice %25 {offsets = [0, 24], sizes = [16, 8], strides = [1, 1]} : vector<16x128xf32> to vector<16x8xf32>
    %75 = vector.extract_strided_slice %25 {offsets = [0, 56], sizes = [16, 8], strides = [1, 1]} : vector<16x128xf32> to vector<16x8xf32>
    %76 = vector.extract_strided_slice %25 {offsets = [0, 88], sizes = [16, 8], strides = [1, 1]} : vector<16x128xf32> to vector<16x8xf32>
    %cst_26 = arith.constant dense<0.000000e+00> : vector<16x16xf32>
    %77 = tpu.matmul %74, %75, %cst_26 {dimension_numbers = #tpu.dot_dimension_numbers<[1], [1], [0], [0], [0, 0, 1, 0], [], []>} : vector<16x8xf32>, vector<16x8xf32>, vector<16x16xf32> -> vector<16x16xf32>
    %78 = arith.addf %77, %3 : vector<16x16xf32>
    %cst_27 = arith.constant dense<0xFF800000> : vector<16xf32>
    %79 = vector.multi_reduction <maximumf>, %78, %cst_27 [1] : vector<16x16xf32> to vector<16xf32>
    %80 = vector.shape_cast %79 : vector<16xf32> to vector<16x1xf32>
    %81 = vector.broadcast %80 : vector<16x1xf32> to vector<16x16xf32>
    %82 = arith.subf %78, %81 : vector<16x16xf32>
    %83 = math.exp %82 : vector<16x16xf32>
    %cst_28 = arith.constant dense<0.000000e+00> : vector<16xf32>
    %84 = vector.multi_reduction <add>, %83, %cst_28 [1] : vector<16x16xf32> to vector<16xf32>
    %85 = vector.shape_cast %84 : vector<16xf32> to vector<16x1xf32>
    %86 = tpu.reciprocal %85 {approx = true} : vector<16x1xf32> -> vector<16x1xf32>
    %cst_29 = arith.constant dense<0.000000e+00> : vector<16x8xf32>
    %87 = tpu.matmul %83, %76, %cst_29 {dimension_numbers = #tpu.dot_dimension_numbers<[1], [0], [0], [1], [0, 0, 1, 1], [], []>} : vector<16x16xf32>, vector<16x8xf32>, vector<16x8xf32> -> vector<16x8xf32>
    %88 = vector.broadcast %86 : vector<16x1xf32> to vector<16x8xf32>
    %89 = arith.mulf %87, %88 : vector<16x8xf32>
    %90 = tpu.concatenate %41, %57, %73, %89 in 1 : vector<16x8xf32>, vector<16x8xf32>, vector<16x8xf32>, vector<16x8xf32> -> vector<16x32xf32>
    %c32 = arith.constant 32 : index
    %c0_30 = arith.constant 0 : index
    %91 = vector.load %arg3[%c32, %c0_30] : memref<224x128xf32, #tpu.memory_space<vmem>>, vector<32x128xf32>
    %cst_31 = arith.constant dense<0.000000e+00> : vector<16x128xf32>
    %92 = tpu.matmul %90, %91, %cst_31 {dimension_numbers = #tpu.dot_dimension_numbers<[1], [0], [0], [1], [0, 0, 1, 1], [], []>} : vector<16x32xf32>, vector<32x128xf32>, vector<16x128xf32> -> vector<16x128xf32>
    %c1 = arith.constant 1 : index
    %c0_32 = arith.constant 0 : index
    %93 = vector.load %arg4[%c1, %c0_32] : memref<8x128xf32, #tpu.memory_space<vmem>>, vector<1x128xf32>
    %94 = vector.broadcast %93 : vector<1x128xf32> to vector<16x128xf32>
    %95 = arith.addf %92, %94 : vector<16x128xf32>
    %96 = arith.addf %1, %95 : vector<16x128xf32>
    %97 = vector.extract_strided_slice %96 {offsets = [0, 0], sizes = [16, 32], strides = [1, 1]} : vector<16x128xf32> to vector<16x32xf32>
    %cst_33 = arith.constant dense<0.000000e+00> : vector<16xf32>
    %98 = vector.multi_reduction <add>, %97, %cst_33 [1] : vector<16x32xf32> to vector<16xf32>
    %99 = vector.shape_cast %98 : vector<16xf32> to vector<16x1xf32>
    %cst_34 = arith.constant 3.200000e+01 : f32
    %100 = vector.broadcast %cst_34 : f32 to vector<16x1xf32>
    %101 = arith.divf %99, %100 : vector<16x1xf32>
    %102 = vector.broadcast %101 : vector<16x1xf32> to vector<16x32xf32>
    %103 = arith.subf %97, %102 : vector<16x32xf32>
    %104 = arith.mulf %103, %103 : vector<16x32xf32>
    %cst_35 = arith.constant dense<0.000000e+00> : vector<16xf32>
    %105 = vector.multi_reduction <add>, %104, %cst_35 [1] : vector<16x32xf32> to vector<16xf32>
    %106 = vector.shape_cast %105 : vector<16xf32> to vector<16x1xf32>
    %cst_36 = arith.constant 0.0322580636 : f32
    %107 = vector.broadcast %cst_36 : f32 to vector<16x1xf32>
    %108 = arith.mulf %106, %107 : vector<16x1xf32>
    %cst_37 = arith.constant 9.99999997E-7 : f32
    %109 = vector.broadcast %cst_37 : f32 to vector<16x1xf32>
    %110 = arith.addf %108, %109 : vector<16x1xf32>
    %111 = math.rsqrt %110 : vector<16x1xf32>
    %112 = vector.broadcast %111 : vector<16x1xf32> to vector<16x32xf32>
    %113 = arith.mulf %103, %112 : vector<16x32xf32>
    %c64 = arith.constant 64 : index
    %c0_38 = arith.constant 0 : index
    %114 = vector.load %arg3[%c64, %c0_38] : memref<224x128xf32, #tpu.memory_space<vmem>>, vector<32x128xf32>
    %cst_39 = arith.constant dense<0.000000e+00> : vector<16x128xf32>
    %115 = tpu.matmul %113, %114, %cst_39 {dimension_numbers = #tpu.dot_dimension_numbers<[1], [0], [0], [1], [0, 0, 1, 1], [], []>} : vector<16x32xf32>, vector<32x128xf32>, vector<16x128xf32> -> vector<16x128xf32>
    %c2 = arith.constant 2 : index
    %c0_40 = arith.constant 0 : index
    %116 = vector.load %arg4[%c2, %c0_40] : memref<8x128xf32, #tpu.memory_space<vmem>>, vector<1x128xf32>
    %117 = vector.broadcast %116 : vector<1x128xf32> to vector<16x128xf32>
    %118 = arith.addf %115, %117 : vector<16x128xf32>
    %cst_41 = arith.constant 0.000000e+00 : f32
    %119 = vector.broadcast %cst_41 : f32 to vector<16x128xf32>
    %120 = arith.maximumf %118, %119 : vector<16x128xf32>
    %c96 = arith.constant 96 : index
    %c0_42 = arith.constant 0 : index
    %121 = vector.load %arg3[%c96, %c0_42] : memref<224x128xf32, #tpu.memory_space<vmem>>, vector<128x128xf32>
    %cst_43 = arith.constant dense<0.000000e+00> : vector<16x128xf32>
    %122 = tpu.matmul %120, %121, %cst_43 {dimension_numbers = #tpu.dot_dimension_numbers<[1], [0], [0], [1], [0, 0, 1, 1], [], []>} : vector<16x128xf32>, vector<128x128xf32>, vector<16x128xf32> -> vector<16x128xf32>
    %c3 = arith.constant 3 : index
    %c0_44 = arith.constant 0 : index
    %123 = vector.load %arg4[%c3, %c0_44] : memref<8x128xf32, #tpu.memory_space<vmem>>, vector<1x128xf32>
    %124 = vector.broadcast %123 : vector<1x128xf32> to vector<16x128xf32>
    %125 = arith.addf %122, %124 : vector<16x128xf32>
    %126 = arith.addf %96, %125 : vector<16x128xf32>
    %c0_45 = arith.constant 0 : index
    %c0_46 = arith.constant 0 : index
    %c0_47 = arith.constant 0 : index
    %127 = vector.load %arg5[%c0_45, %c0_46, %c0_47] : memref<1x16x128xf32, #tpu.memory_space<vmem>>, vector<1x16x128xf32>
    %128 = vector.shape_cast %127 : vector<1x16x128xf32> to vector<16x128xf32>
    %129 = vector.shape_cast %126 : vector<16x128xf32> to vector<1x16x128xf32>
    tpu.vector_store %arg5[%c0_45, %c0_46, %c0_47], %129 {strides = array<i32>} : memref<1x16x128xf32, #tpu.memory_space<vmem>>, vector<1x16x128xf32>,
    return
  }
  func.func @transform_0(%arg0: i32) -> (i32, i32, i32) {
    %c0_i32 = arith.constant 0 : i32
    %c0_i32_0 = arith.constant 0 : i32
    %c0_i32_1 = arith.constant 0 : i32
    return %arg0, %c0_i32, %c0_i32_0 : i32, i32, i32
  }
  func.func @transform_1(%arg0: i32) -> (i32, i32, i32) {
    %c0_i32 = arith.constant 0 : i32
    %c0_i32_0 = arith.constant 0 : i32
    %c0_i32_1 = arith.constant 0 : i32
    return %arg0, %c0_i32, %c0_i32_0 : i32, i32, i32
  }
  func.func @transform_2(%arg0: i32) -> (i32, i32) {
    %c0_i32 = arith.constant 0 : i32
    %c0_i32_0 = arith.constant 0 : i32
    %c0_i32_1 = arith.constant 0 : i32
    return %c0_i32, %c0_i32_0 : i32, i32
  }
  func.func @transform_3(%arg0: i32) -> (i32, i32) {
    %c0_i32 = arith.constant 0 : i32
    %c0_i32_0 = arith.constant 0 : i32
    %c0_i32_1 = arith.constant 0 : i32
    return %c0_i32, %c0_i32_0 : i32, i32
  }
  func.func @transform_4(%arg0: i32) -> (i32, i32, i32) {
    %c0_i32 = arith.constant 0 : i32
    %c0_i32_0 = arith.constant 0 : i32
    %c0_i32_1 = arith.constant 0 : i32
    return %arg0, %c0_i32, %c0_i32_0 : i32, i32, i32
  }
}

</mosaic_0001>

<llo_original>
// kernel: tpu_custom_call.1
$region0: #{tpu_custom_call.1}
  #allocation0 [shape = 'u32[]', space=smem, size = 0x4, offset = 0x4, fixed_abs, tag = 'smem constant byte address 0x4 - core index']
  #allocation1 [shape = 'u32[144,128]{1,0:T(1,128)}', space=vmem, size = 0x12000, scoped, tag = 'internal scratch']
  %s0 = inlined_call_operand.hbm [shape: f32[1,16,128], index: 0, kind: input, shape index: {}]
  %s1 = inlined_call_operand.hbm [shape: f32[1,16,16], index: 1, kind: input, shape index: {}]
  %s2 = inlined_call_operand.hbm [shape: f32[224,128], index: 2, kind: input, shape index: {}]
  %s3 = inlined_call_operand.vmem [shape: f32[8,128], index: 3, kind: input, shape index: {}]
  %s4 = inlined_call_operand.hbm [shape: f32[1,16,128], index: 4, kind: output, shape index: {}]
  %s5 = sld [smem:[#allocation0]]
  $region38: #{tpu_custom_call.1} parent=0
    _
  %s7 = ssub.s32 1, %s5
  %s8 = scalar_select 0, %s7, %s5
  $region1: #{tpu_custom_call.1} parent=0
    #allocation2 [shape = 'u8[8192]{0}', space=vmem, size = 0x2000, scoped, tag = 'input window, operand 0, single buffered']
    #allocation3 [shape = 's32[1]{0}', space=sflag, size = 0x4, scoped, tag = 'scoped memory for tpu_custom_call.1']
    #allocation4 [shape = 's32[1]{0}', space=sflag, size = 0x4, scoped, tag = 'scoped memory for tpu_custom_call.1']
    #allocation5 [shape = 'u8[8192]{0}', space=vmem, size = 0x2000, scoped, tag = 'input window, operand 1, single buffered']
    #allocation6 [shape = 's32[1]{0}', space=sflag, size = 0x4, scoped, tag = 'scoped memory for tpu_custom_call.1']
    #allocation7 [shape = 'u8[114688]{0}', space=vmem, size = 0x1c000, scoped, tag = 'input window, operand 2, single buffered']
    #allocation8 [shape = 'u8[8192]{0}', space=vmem, size = 0x2000, scoped, tag = 'output window, operand 0, single buffered']
    %9 = vsyncpa [#allocation3], 0
    %10 = vsyncpa [#allocation6], 0
    %11 = vsyncpa [#allocation4], 0
    // Predicated region
    $region2: #{tpu_custom_call.1} parent=1 // pred_check
      _
    $region3: #{tpu_custom_call.1} parent=1 // pred_check_branch
      %13 = sbr.rel (0) target = $region5
    $region4: #{tpu_custom_call.1} parent=1 // pred_region
      %s15 = ssub.s32 256, 256
      %16 = vsyncadd [#allocation3], %s15
      %s17 = sshll.u32 [#allocation2], 4
      %s18 = int_to_ptr.vmem [resolvable:$true] %s17
      %23 = dma.hbm_to_vmem [thread:$0]  %s0, 256, %s18, [#allocation3], 128, 128, 8
    $region5: #{tpu_custom_call.1} parent=1 // pred_fallthru
      _
    // Predicated region
    $region6: #{tpu_custom_call.1} parent=1 // pred_check
      _
    $region7: #{tpu_custom_call.1} parent=1 // pred_check_branch
      %25 = sbr.rel (0) target = $region9
    $region8: #{tpu_custom_call.1} parent=1 // pred_region
      %s27 = ssub.s32 256, 256
      %28 = vsyncadd [#allocation6], %s27
      %s29 = sshll.u32 [#allocation5], 4
      %s30 = int_to_ptr.vmem [resolvable:$true] %s29
      %35 = dma.hbm_to_vmem [thread:$0]  %s1, 256, %s30, [#allocation6], 128, 128, 8
    $region9: #{tpu_custom_call.1} parent=1 // pred_fallthru
      _
    // Predicated region
    $region10: #{tpu_custom_call.1} parent=1 // pred_check
      _
    $region11: #{tpu_custom_call.1} parent=1 // pred_check_branch
      %37 = sbr.rel (0) target = $region13
    $region12: #{tpu_custom_call.1} parent=1 // pred_region
      %s39 = ssub.s32 3584, 3584
      %40 = vsyncadd [#allocation6], %s39
      %s41 = sshll.u32 [#allocation7], 4
      %s42 = int_to_ptr.vmem [resolvable:$true] %s41
      %47 = dma.hbm_to_vmem [thread:$0]  %s2, 3584, %s42, [#allocation6], 128, 128, 8
    $region13: #{tpu_custom_call.1} parent=1 // pred_fallthru
      _
    // Predicated region
    $region14: #{tpu_custom_call.1} parent=1 // pred_check
      _
    $region15: #{tpu_custom_call.1} parent=1 // pred_check_branch
      %49 = sbr.rel (0) target = $region17
    $region16: #{tpu_custom_call.1} parent=1 // pred_region
      _
    $region17: #{tpu_custom_call.1} parent=1 // pred_fallthru
      _
    // Predicated region
    $region18: #{tpu_custom_call.1} parent=1 // pred_check
      _
    $region19: #{tpu_custom_call.1} parent=1 // pred_check_branch
      %51 = sbr.rel (0) target = $region21
    $region20: #{tpu_custom_call.1} parent=1 // pred_region
      %52 = dma.done [#allocation3], 256
    $region21: #{tpu_custom_call.1} parent=1 // pred_fallthru
      _
    // Predicated region
    $region22: #{tpu_custom_call.1} parent=1 // pred_check
      _
    $region23: #{tpu_custom_call.1} parent=1 // pred_check_branch
      %54 = sbr.rel (0) target = $region25
    $region24: #{tpu_custom_call.1} parent=1 // pred_region
      %55 = dma.done [#allocation6], 256
    $region25: #{tpu_custom_call.1} parent=1 // pred_fallthru
      _
    // Predicated region
    $region26: #{tpu_custom_call.1} parent=1 // pred_check
      _
    $region27: #{tpu_custom_call.1} parent=1 // pred_check_branch
      %57 = sbr.rel (0) target = $region29
    $region28: #{tpu_custom_call.1} parent=1 // pred_region
      %58 = dma.done [#allocation6], 3584
    $region29: #{tpu_custom_call.1} parent=1 // pred_fallthru
      _
    %v59 = vld [vmem:[#allocation2] sm:$0xff]
    %v60 = vld [vmem:[#allocation2 + $0x8] sm:$0xff]
    %v61 = vld [vmem:[#allocation5] sm:$0xff]
    %v62 = vld [vmem:[#allocation5 + $0x8] sm:$0xff]
    %vm63 = vcmask 261120
    %v64 = vsel %vm63, %v59, 0.0
    %65 = vadd.xlane.f32.xlu0 %v64
    %v66 = vpop.xlane.xlu0 %65
    %v67 = vsel %vm63, %v60, 0.0
    %68 = vadd.xlane.f32.xlu0 %v67
    %v69 = vpop.xlane.xlu0 %68
    %v70 = vrcp.pop 32.0
    %v71 = vmul.f32 %v66, %v70
    %v72 = vmul.f32 %v69, %v70
    %v73 = vsub.f32 %v59, %v71
    %v74 = vsub.f32 %v60, %v72
    %v75 = vmul.f32 %v73, %v73
    %v76 = vmul.f32 %v74, %v74
    %v77 = vsel %vm63, %v75, 0.0
    %78 = vadd.xlane.f32.xlu0 %v77
    %v79 = vpop.xlane.xlu0 %78
    %v80 = vsel %vm63, %v76, 0.0
    %81 = vadd.xlane.f32.xlu0 %v80
    %v82 = vpop.xlane.xlu0 %81
    %v83 = vmul.f32 %v79, 0.032258064
    %v84 = vmul.f32 %v82, 0.032258064
    %v85 = vadd.f32 %v83, 1e-06
    %v86 = vadd.f32 %v84, 1e-06
    %v87 = vrsqrt.pop %v85
    %v88 = vrsqrt.pop %v86
    %v89 = vmul.f32 %v73, %v87
    %v90 = vmul.f32 %v74, %v88
    %v91 = vld [vmem:[#allocation7] sm:$0xff]
    %v92 = vld [vmem:[#allocation7 + $0x8] sm:$0xff]
    %v93 = vld [vmem:[#allocation7 + $0x10] sm:$0xff]
    %v94 = vld [vmem:[#allocation7 + $0x18] sm:$0xff]
    %v95 = vld [vmem:[%s3] sm:$0x1]
    %v96 = vlaneseq
    %v97 = vshrl.u32 %v96, 7
    %v98 = vsub.s32 0, %v97
    %v99 = vrot.slane %v95, %v98
    %v101 = vsel %vm63, %v89, 0
    %v104 = vsel %vm63, %v90, 0
    %106 = vmatprep.subr.mxu0 0.0
    %107 = vmatpush1.msra.mxu0 %v91
    %108 = vmatprep.subr.mxu0 0.0
    %109 = vmatpush1.msra.mxu0 %v92
    %110 = vmatprep.subr.mxu0 0.0
    %111 = vmatpush1.msra.mxu0 %v93
    %112 = vmatprep.subr.mxu0 0.0
    %113 = vmatpush1.msra.mxu0 %v94
    %114 = vmatprep.subr.mxu0 0.0
    %115 = vmatpush1.msra.mxu0 0.0
    %116 = vmatprep.subr.mxu0 0.0
    %117 = vmatpush1.msra.mxu0 0.0
    %118 = vmatprep.subr.mxu0 0.0
    %119 = vmatpush1.msra.mxu0 0.0
    %120 = vmatprep.subr.mxu0 0.0
    %121 = vmatpush1.msra.mxu0 0.0
    %122 = vmatprep.subr.mxu0 0.0
    %123 = vmatpush1.msra.mxu0 0.0
    %124 = vmatprep.subr.mxu0 0.0
    %125 = vmatpush1.msra.mxu0 0.0
    %126 = vmatprep.subr.mxu0 0.0
    %127 = vmatpush1.msra.mxu0 0.0
    %128 = vmatprep.subr.mxu0 0.0
    %129 = vmatpush1.msra.mxu0 0.0
    %130 = vmatprep.subr.mxu0 0.0
    %131 = vmatpush1.msra.mxu0 0.0
    %132 = vmatprep.subr.mxu0 0.0
    %133 = vmatpush1.msra.mxu0 0.0
    %134 = vmatprep.subr.mxu0 0.0
    %135 = vmatpush1.msra.mxu0 0.0
    %136 = vmatprep.subr.mxu0 0.0
    %137 = vmatpush1.msra.mxu0 0.0
    %138 = vmatprep.subr.mxu0 0.0
    %139 = vmatpush1.msra.mxu0 0.0
    %140 = vmatprep.subr.mxu0 0.0
    %141 = vmatpush1.msra.mxu0 0.0
    %142 = vmatprep.subr.mxu0 0.0
    %143 = vmatpush1.msra.mxu0 0.0
    %144 = vmatprep.subr.mxu0 0.0
    %145 = vmatpush1.msra.mxu0 0.0
    %146 = vmatprep.subr.mxu0 0.0
    %147 = vmatpush1.msra.mxu0 0.0
    %148 = vmatprep.subr.mxu0 0.0
    %149 = vmatpush1.msra.mxu0 0.0
    %150 = vmatprep.subr.mxu0 0.0
    %151 = vmatpush1.msra.mxu0 0.0
    %152 = vmatprep.subr.mxu0 0.0
    %153 = vmatpush1.msra.mxu0 0.0
    %154 = vmatprep.subr.mxu0 0.0
    %155 = vmatpush1.msra.mxu0 0.0
    %156 = vmatprep.subr.mxu0 0.0
    %157 = vmatpush1.msra.mxu0 0.0
    %158 = vmatprep.subr.mxu0 0.0
    %159 = vmatpush1.msra.mxu0 0.0
    %160 = vmatprep.subr.mxu0 0.0
    %161 = vmatpush1.msra.mxu0 0.0
    %162 = vmatprep.subr.mxu0 0.0
    %163 = vmatpush1.msra.mxu0 0.0
    %164 = vmatprep.subr.mxu0 0.0
    %165 = vmatpush1.msra.mxu0 0.0
    %166 = vmatprep.subr.mxu0 0.0
    %167 = vmatpush1.msra.mxu0 0.0
    %168 = vmatprep.subr.mxu0 0.0
    %169 = vmatpush1.msra.mxu0 0.0
    %170 = vmatprep.mubr.f32.mxu0 0.0
    %171 = vmatmul.mubr.f32.gmra.mrb[0].mxu0 %v101
    %v172 = vpop.f32.mrb[0].mxu0
    %v173 = vadd.f32 %v99, %v172
    %v174 = vpop.f32.mrb[0].mxu0
    %175 = vmatprep.mubr.f32.mxu0 0.0
    %176 = vmatmul.mubr.f32.gmra.mrb[0].mxu0 %v104
    %v177 = vpop.f32.mrb[0].mxu0
    %v178 = vadd.f32 %v99, %v177
    %v179 = vpop.f32.mrb[0].mxu0
    %180 = vdwg.mxu0
    %183 = vrot.lane.b32.xlu0 %v173, 96
    %v184 = vpop.permute.xlu0 %183
    %185 = vrot.lane.b32.xlu0 %v178, 96
    %v186 = vpop.permute.xlu0 %185
    %vm187 = vcmask 64512
    %v188 = vsel %vm187, %v173, 0
    %v190 = vsel %vm187, %v178, 0
    %v192 = vsel %vm187, %v184, 0
    %v194 = vsel %vm187, %v186, 0
    %196 = vmatprep.subr.mxu0 0.0
    %197 = vmatpush1.xpose.msra.mxu0 %v192
    %198 = vmatprep.subr.mxu0 0.0
    %199 = vmatpush1.xpose.msra.mxu0 %v194
    %200 = vmatprep.subr.mxu0 0.0
    %201 = vmatpush1.xpose.msra.mxu0 0.0
    %202 = vmatprep.subr.mxu0 0.0
    %203 = vmatpush1.xpose.msra.mxu0 0.0
    %204 = vmatprep.subr.mxu0 0.0
    %205 = vmatpush1.xpose.msra.mxu0 0.0
    %206 = vmatprep.subr.mxu0 0.0
    %207 = vmatpush1.xpose.msra.mxu0 0.0
    %208 = vmatprep.subr.mxu0 0.0
    %209 = vmatpush1.xpose.msra.mxu0 0.0
    %210 = vmatprep.subr.mxu0 0.0
    %211 = vmatpush1.xpose.msra.mxu0 0.0
    %212 = vmatprep.subr.mxu0 0.0
    %213 = vmatpush1.xpose.msra.mxu0 0.0
    %214 = vmatprep.subr.mxu0 0.0
    %215 = vmatpush1.xpose.msra.mxu0 0.0
    %216 = vmatprep.subr.mxu0 0.0
    %217 = vmatpush1.xpose.msra.mxu0 0.0
    %218 = vmatprep.subr.mxu0 0.0
    %219 = vmatpush1.xpose.msra.mxu0 0.0
    %220 = vmatprep.subr.mxu0 0.0
    %221 = vmatpush1.xpose.msra.mxu0 0.0
    %222 = vmatprep.subr.mxu0 0.0
    %223 = vmatpush1.xpose.msra.mxu0 0.0
    %224 = vmatprep.subr.mxu0 0.0
    %225 = vmatpush1.xpose.msra.mxu0 0.0
    %226 = vmatprep.subr.mxu0 0.0
    %227 = vmatpush1.xpose.msra.mxu0 0.0
    %228 = vmatprep.subr.mxu0 0.0
    %229 = vmatpush1.xpose.msra.mxu0 0.0
    %230 = vmatprep.subr.mxu0 0.0
    %231 = vmatpush1.xpose.msra.mxu0 0.0
    %232 = vmatprep.subr.mxu0 0.0
    %233 = vmatpush1.xpose.msra.mxu0 0.0
    %234 = vmatprep.subr.mxu0 0.0
    %235 = vmatpush1.xpose.msra.mxu0 0.0
    %236 = vmatprep.subr.mxu0 0.0
    %237 = vmatpush1.xpose.msra.mxu0 0.0
    %238 = vmatprep.subr.mxu0 0.0
    %239 = vmatpush1.xpose.msra.mxu0 0.0
    %240 = vmatprep.subr.mxu0 0.0
    %241 = vmatpush1.xpose.msra.mxu0 0.0
    %242 = vmatprep.subr.mxu0 0.0
    %243 = vmatpush1.xpose.msra.mxu0 0.0
    %244 = vmatprep.subr.mxu0 0.0
    %245 = vmatpush1.xpose.msra.mxu0 0.0
    %246 = vmatprep.subr.mxu0 0.0
    %247 = vmatpush1.xpose.msra.mxu0 0.0
    %248 = vmatprep.subr.mxu0 0.0
    %249 = vmatpush1.xpose.msra.mxu0 0.0
    %250 = vmatprep.subr.mxu0 0.0
    %251 = vmatpush1.xpose.msra.mxu0 0.0
    %252 = vmatprep.subr.mxu0 0.0
    %253 = vmatpush1.xpose.msra.mxu0 0.0
    %254 = vmatprep.subr.mxu0 0.0
    %255 = vmatpush1.xpose.msra.mxu0 0.0
    %256 = vmatprep.subr.mxu0 0.0
    %257 = vmatpush1.xpose.msra.mxu0 0.0
    %258 = vmatprep.subr.mxu0 0.0
    %259 = vmatpush1.xpose.msra.mxu0 0.0
    %260 = vmatprep.mubr.f32.mxu0 0.0
    %261 = vmatmul.mubr.f32.gmra.mrb[0].mxu0 %v188
    %v262 = vpop.f32.mrb[0].mxu0
    %v263 = vadd.f32 %v61, %v262
    %v264 = vpop.f32.mrb[0].mxu0
    %265 = vmatprep.mubr.f32.mxu0 0.0
    %266 = vmatmul.mubr.f32.gmra.mrb[0].mxu0 %v190
    %v267 = vpop.f32.mrb[0].mxu0
    %v268 = vadd.f32 %v62, %v267
    %v269 = vpop.f32.mrb[0].mxu0
    %270 = vdwg.mxu0
    %vm271 = vcmask 130048
    %v272 = vsel %vm271, %v263, -inf
    %273 = vmax.xlane.f32.xlu0 %v272
    %v274 = vpop.xlane.xlu0 %273
    %v275 = vsel %vm271, %v268, -inf
    %276 = vmax.xlane.f32.xlu0 %v275
    %v277 = vpop.xlane.xlu0 %276
    %v278 = vsub.f32 %v263, %v274
    %v279 = vsub.f32 %v268, %v277
    %v280 = vmul.f32 %v278, 1.442695
    %v281 = vpow.pop %v280
    %v282 = vmul.f32 %v279, 1.442695
    %v283 = vpow.pop %v282
    %v284 = vsel %vm271, %v281, 0.0
    %285 = vadd.xlane.f32.xlu0 %v284
    %v286 = vpop.xlane.xlu0 %285
    %v287 = vsel %vm271, %v283, 0.0
    %288 = vadd.xlane.f32.xlu0 %v287
    %v289 = vpop.xlane.xlu0 %288
    %v290 = vrcp.pop %v286
    %v291 = vrcp.pop %v289
    %292 = vrot.lane.b32.xlu0 %v173, 64
    %v293 = vpop.permute.xlu0 %292
    %294 = vrot.lane.b32.xlu0 %v178, 64
    %v295 = vpop.permute.xlu0 %294
    %v299 = vsel %vm271, %v281, 0
    %v302 = vsel %vm271, %v283, 0
    %304 = vmatprep.subr.mxu0 0.0
    %305 = vmatpush1.msra.mxu0 %v293
    %306 = vmatprep.subr.mxu0 0.0
    %307 = vmatpush1.msra.mxu0 %v295
    %308 = vmatprep.subr.mxu0 0.0
    %309 = vmatpush1.msra.mxu0 0.0
    %310 = vmatprep.subr.mxu0 0.0
    %311 = vmatpush1.msra.mxu0 0.0
    %312 = vmatprep.subr.mxu0 0.0
    %313 = vmatpush1.msra.mxu0 0.0
    %314 = vmatprep.subr.mxu0 0.0
    %315 = vmatpush1.msra.mxu0 0.0
    %316 = vmatprep.subr.mxu0 0.0
    %317 = vmatpush1.msra.mxu0 0.0
    %318 = vmatprep.subr.mxu0 0.0
    %319 = vmatpush1.msra.mxu0 0.0
    %320 = vmatprep.subr.mxu0 0.0
    %321 = vmatpush1.msra.mxu0 0.0
    %322 = vmatprep.subr.mxu0 0.0
    %323 = vmatpush1.msra.mxu0 0.0
    %324 = vmatprep.subr.mxu0 0.0
    %325 = vmatpush1.msra.mxu0 0.0
    %326 = vmatprep.subr.mxu0 0.0
    %327 = vmatpush1.msra.mxu0 0.0
    %328 = vmatprep.subr.mxu0 0.0
    %329 = vmatpush1.msra.mxu0 0.0
    %330 = vmatprep.subr.mxu0 0.0
    %331 = vmatpush1.msra.mxu0 0.0
    %332 = vmatprep.subr.mxu0 0.0
    %333 = vmatpush1.msra.mxu0 0.0
    %334 = vmatprep.subr.mxu0 0.0
    %335 = vmatpush1.msra.mxu0 0.0
    %336 = vmatprep.subr.mxu0 0.0
    %337 = vmatpush1.msra.mxu0 0.0
    %338 = vmatprep.subr.mxu0 0.0
    %339 = vmatpush1.msra.mxu0 0.0
    %340 = vmatprep.subr.mxu0 0.0
    %341 = vmatpush1.msra.mxu0 0.0
    %342 = vmatprep.subr.mxu0 0.0
    %343 = vmatpush1.msra.mxu0 0.0
    %344 = vmatprep.subr.mxu0 0.0
    %345 = vmatpush1.msra.mxu0 0.0
    %346 = vmatprep.subr.mxu0 0.0
    %347 = vmatpush1.msra.mxu0 0.0
    %348 = vmatprep.subr.mxu0 0.0
    %349 = vmatpush1.msra.mxu0 0.0
    %350 = vmatprep.subr.mxu0 0.0
    %351 = vmatpush1.msra.mxu0 0.0
    %352 = vmatprep.subr.mxu0 0.0
    %353 = vmatpush1.msra.mxu0 0.0
    %354 = vmatprep.subr.mxu0 0.0
    %355 = vmatpush1.msra.mxu0 0.0
    %356 = vmatprep.subr.mxu0 0.0
    %357 = vmatpush1.msra.mxu0 0.0
    %358 = vmatprep.subr.mxu0 0.0
    %359 = vmatpush1.msra.mxu0 0.0
    %360 = vmatprep.subr.mxu0 0.0
    %361 = vmatpush1.msra.mxu0 0.0
    %362 = vmatprep.subr.mxu0 0.0
    %363 = vmatpush1.msra.mxu0 0.0
    %364 = vmatprep.subr.mxu0 0.0
    %365 = vmatpush1.msra.mxu0 0.0
    %366 = vmatprep.subr.mxu0 0.0
    %367 = vmatpush1.msra.mxu0 0.0
    %368 = vmatprep.mubr.f32.mxu0 0.0
    %369 = vmatmul.mubr.f32.gmra.mrb[0].mxu0 %v299
    %v370 = vpop.f32.mrb[0].mxu0
    %v371 = vadd.f32 0.0, %v370
    %v372 = vpop.f32.mrb[0].mxu0
    %373 = vmatprep.mubr.f32.mxu0 0.0
    %374 = vmatmul.mubr.f32.gmra.mrb[0].mxu0 %v302
    %v375 = vpop.f32.mrb[0].mxu0
    %v376 = vadd.f32 0.0, %v375
    %v377 = vpop.f32.mrb[0].mxu0
    %378 = vdwg.mxu0
    %v379 = vmul.f32 %v371, %v290
    %v380 = vmul.f32 %v376, %v291
    %381 = vrot.lane.b32.xlu0 %v173, 120
    %v382 = vpop.permute.xlu0 %381
    %383 = vrot.lane.b32.xlu0 %v178, 120
    %v384 = vpop.permute.xlu0 %383
    %385 = vrot.lane.b32.xlu0 %v173, 88
    %v386 = vpop.permute.xlu0 %385
    %387 = vrot.lane.b32.xlu0 %v178, 88
    %v388 = vpop.permute.xlu0 %387
    %v389 = vsel %vm187, %v382, 0
    %v391 = vsel %vm187, %v384, 0
    %v393 = vsel %vm187, %v386, 0
    %v395 = vsel %vm187, %v388, 0
    %397 = vmatprep.subr.mxu0 0.0
    %398 = vmatpush1.xpose.msra.mxu0 %v393
    %399 = vmatprep.subr.mxu0 0.0
    %400 = vmatpush1.xpose.msra.mxu0 %v395
    %401 = vmatprep.subr.mxu0 0.0
    %402 = vmatpush1.xpose.msra.mxu0 0.0
    %403 = vmatprep.subr.mxu0 0.0
    %404 = vmatpush1.xpose.msra.mxu0 0.0
    %405 = vmatprep.subr.mxu0 0.0
    %406 = vmatpush1.xpose.msra.mxu0 0.0
    %407 = vmatprep.subr.mxu0 0.0
    %408 = vmatpush1.xpose.msra.mxu0 0.0
    %409 = vmatprep.subr.mxu0 0.0
    %410 = vmatpush1.xpose.msra.mxu0 0.0
    %411 = vmatprep.subr.mxu0 0.0
    %412 = vmatpush1.xpose.msra.mxu0 0.0
    %413 = vmatprep.subr.mxu0 0.0
    %414 = vmatpush1.xpose.msra.mxu0 0.0
    %415 = vmatprep.subr.mxu0 0.0
    %416 = vmatpush1.xpose.msra.mxu0 0.0
    %417 = vmatprep.subr.mxu0 0.0
    %418 = vmatpush1.xpose.msra.mxu0 0.0
    %419 = vmatprep.subr.mxu0 0.0
    %420 = vmatpush1.xpose.msra.mxu0 0.0
    %421 = vmatprep.subr.mxu0 0.0
    %422 = vmatpush1.xpose.msra.mxu0 0.0
    %423 = vmatprep.subr.mxu0 0.0
    %424 = vmatpush1.xpose.msra.mxu0 0.0
    %425 = vmatprep.subr.mxu0 0.0
    %426 = vmatpush1.xpose.msra.mxu0 0.0
    %427 = vmatprep.subr.mxu0 0.0
    %428 = vmatpush1.xpose.msra.mxu0 0.0
    %429 = vmatprep.subr.mxu0 0.0
    %430 = vmatpush1.xpose.msra.mxu0 0.0
    %431 = vmatprep.subr.mxu0 0.0
    %432 = vmatpush1.xpose.msra.mxu0 0.0
    %433 = vmatprep.subr.mxu0 0.0
    %434 = vmatpush1.xpose.msra.mxu0 0.0
    %435 = vmatprep.subr.mxu0 0.0
    %436 = vmatpush1.xpose.msra.mxu0 0.0
    %437 = vmatprep.subr.mxu0 0.0
    %438 = vmatpush1.xpose.msra.mxu0 0.0
    %439 = vmatprep.subr.mxu0 0.0
    %440 = vmatpush1.xpose.msra.mxu0 0.0
    %441 = vmatprep.subr.mxu0 0.0
    %442 = vmatpush1.xpose.msra.mxu0 0.0
    %443 = vmatprep.subr.mxu0 0.0
    %444 = vmatpush1.xpose.msra.mxu0 0.0
    %445 = vmatprep.subr.mxu0 0.0
    %446 = vmatpush1.xpose.msra.mxu0 0.0
    %447 = vmatprep.subr.mxu0 0.0
    %448 = vmatpush1.xpose.msra.mxu0 0.0
    %449 = vmatprep.subr.mxu0 0.0
    %450 = vmatpush1.xpose.msra.mxu0 0.0
    %451 = vmatprep.subr.mxu0 0.0
    %452 = vmatpush1.xpose.msra.mxu0 0.0
    %453 = vmatprep.subr.mxu0 0.0
    %454 = vmatpush1.xpose.msra.mxu0 0.0
    %455 = vmatprep.subr.mxu0 0.0
    %456 = vmatpush1.xpose.msra.mxu0 0.0
    %457 = vmatprep.subr.mxu0 0.0
    %458 = vmatpush1.xpose.msra.mxu0 0.0
    %459 = vmatprep.subr.mxu0 0.0
    %460 = vmatpush1.xpose.msra.mxu0 0.0
    %461 = vmatprep.mubr.f32.mxu0 0.0
    %462 = vmatmul.mubr.f32.gmra.mrb[0].mxu0 %v389
    %v463 = vpop.f32.mrb[0].mxu0
    %v464 = vadd.f32 %v61, %v463
    %v465 = vpop.f32.mrb[0].mxu0
    %466 = vmatprep.mubr.f32.mxu0 0.0
    %467 = vmatmul.mubr.f32.gmra.mrb[0].mxu0 %v391
    %v468 = vpop.f32.mrb[0].mxu0
    %v469 = vadd.f32 %v62, %v468
    %v470 = vpop.f32.mrb[0].mxu0
    %471 = vdwg.mxu0
    %v472 = vsel %vm271, %v464, -inf
    %473 = vmax.xlane.f32.xlu0 %v472
    %v474 = vpop.xlane.xlu0 %473
    %v475 = vsel %vm271, %v469, -inf
    %476 = vmax.xlane.f32.xlu0 %v475
    %v477 = vpop.xlane.xlu0 %476
    %v478 = vsub.f32 %v464, %v474
    %v479 = vsub.f32 %v469, %v477
    %v480 = vmul.f32 %v478, 1.442695
    %v481 = vpow.pop %v480
    %v482 = vmul.f32 %v479, 1.442695
    %v483 = vpow.pop %v482
    %v484 = vsel %vm271, %v481, 0.0
    %485 = vadd.xlane.f32.xlu0 %v484
    %v486 = vpop.xlane.xlu0 %485
    %v487 = vsel %vm271, %v483, 0.0
    %488 = vadd.xlane.f32.xlu0 %v487
    %v489 = vpop.xlane.xlu0 %488
    %v490 = vrcp.pop %v486
    %v491 = vrcp.pop %v489
    %492 = vrot.lane.b32.xlu0 %v173, 56
    %v493 = vpop.permute.xlu0 %492
    %494 = vrot.lane.b32.xlu0 %v178, 56
    %v495 = vpop.permute.xlu0 %494
    %v499 = vsel %vm271, %v481, 0
    %v502 = vsel %vm271, %v483, 0
    %504 = vmatprep.subr.mxu0 0.0
    %505 = vmatpush1.msra.mxu0 %v493
    %506 = vmatprep.subr.mxu0 0.0
    %507 = vmatpush1.msra.mxu0 %v495
    %508 = vmatprep.subr.mxu0 0.0
    %509 = vmatpush1.msra.mxu0 0.0
    %510 = vmatprep.subr.mxu0 0.0
    %511 = vmatpush1.msra.mxu0 0.0
    %512 = vmatprep.subr.mxu0 0.0
    %513 = vmatpush1.msra.mxu0 0.0
    %514 = vmatprep.subr.mxu0 0.0
    %515 = vmatpush1.msra.mxu0 0.0
    %516 = vmatprep.subr.mxu0 0.0
    %517 = vmatpush1.msra.mxu0 0.0
    %518 = vmatprep.subr.mxu0 0.0
    %519 = vmatpush1.msra.mxu0 0.0
    %520 = vmatprep.subr.mxu0 0.0
    %521 = vmatpush1.msra.mxu0 0.0
    %522 = vmatprep.subr.mxu0 0.0
    %523 = vmatpush1.msra.mxu0 0.0
    %524 = vmatprep.subr.mxu0 0.0
    %525 = vmatpush1.msra.mxu0 0.0
    %526 = vmatprep.subr.mxu0 0.0
    %527 = vmatpush1.msra.mxu0 0.0
    %528 = vmatprep.subr.mxu0 0.0
    %529 = vmatpush1.msra.mxu0 0.0
    %530 = vmatprep.subr.mxu0 0.0
    %531 = vmatpush1.msra.mxu0 0.0
    %532 = vmatprep.subr.mxu0 0.0
    %533 = vmatpush1.msra.mxu0 0.0
    %534 = vmatprep.subr.mxu0 0.0
    %535 = vmatpush1.msra.mxu0 0.0
    %536 = vmatprep.subr.mxu0 0.0
    %537 = vmatpush1.msra.mxu0 0.0
    %538 = vmatprep.subr.mxu0 0.0
    %539 = vmatpush1.msra.mxu0 0.0
    %540 = vmatprep.subr.mxu0 0.0
    %541 = vmatpush1.msra.mxu0 0.0
    %542 = vmatprep.subr.mxu0 0.0
    %543 = vmatpush1.msra.mxu0 0.0
    %544 = vmatprep.subr.mxu0 0.0
    %545 = vmatpush1.msra.mxu0 0.0
    %546 = vmatprep.subr.mxu0 0.0
    %547 = vmatpush1.msra.mxu0 0.0
    %548 = vmatprep.subr.mxu0 0.0
    %549 = vmatpush1.msra.mxu0 0.0
    %550 = vmatprep.subr.mxu0 0.0
    %551 = vmatpush1.msra.mxu0 0.0
    %552 = vmatprep.subr.mxu0 0.0
    %553 = vmatpush1.msra.mxu0 0.0
    %554 = vmatprep.subr.mxu0 0.0
    %555 = vmatpush1.msra.mxu0 0.0
    %556 = vmatprep.subr.mxu0 0.0
    %557 = vmatpush1.msra.mxu0 0.0
    %558 = vmatprep.subr.mxu0 0.0
    %559 = vmatpush1.msra.mxu0 0.0
    %560 = vmatprep.subr.mxu0 0.0
    %561 = vmatpush1.msra.mxu0 0.0
    %562 = vmatprep.subr.mxu0 0.0
    %563 = vmatpush1.msra.mxu0 0.0
    %564 = vmatprep.subr.mxu0 0.0
    %565 = vmatpush1.msra.mxu0 0.0
    %566 = vmatprep.subr.mxu0 0.0
    %567 = vmatpush1.msra.mxu0 0.0
    %568 = vmatprep.mubr.f32.mxu0 0.0
    %569 = vmatmul.mubr.f32.gmra.mrb[0].mxu0 %v499
    %v570 = vpop.f32.mrb[0].mxu0
    %v571 = vadd.f32 0.0, %v570
    %v572 = vpop.f32.mrb[0].mxu0
    %573 = vmatprep.mubr.f32.mxu0 0.0
    %574 = vmatmul.mubr.f32.gmra.mrb[0].mxu0 %v502
    %v575 = vpop.f32.mrb[0].mxu0
    %v576 = vadd.f32 0.0, %v575
    %v577 = vpop.f32.mrb[0].mxu0
    %578 = vdwg.mxu0
    %v579 = vmul.f32 %v571, %v490
    %v580 = vmul.f32 %v576, %v491
    %581 = vrot.lane.b32.xlu0 %v173, 112
    %v582 = vpop.permute.xlu0 %581
    %583 = vrot.lane.b32.xlu0 %v178, 112
    %v584 = vpop.permute.xlu0 %583
    %585 = vrot.lane.b32.xlu0 %v173, 80
    %v586 = vpop.permute.xlu0 %585
    %587 = vrot.lane.b32.xlu0 %v178, 80
    %v588 = vpop.permute.xlu0 %587
    %v589 = vsel %vm187, %v582, 0
    %v591 = vsel %vm187, %v584, 0
    %v593 = vsel %vm187, %v586, 0
    %v595 = vsel %vm187, %v588, 0
    %597 = vmatprep.subr.mxu0 0.0
    %598 = vmatpush1.xpose.msra.mxu0 %v593
    %599 = vmatprep.subr.mxu0 0.0
    %600 = vmatpush1.xpose.msra.mxu0 %v595
    %601 = vmatprep.subr.mxu0 0.0
    %602 = vmatpush1.xpose.msra.mxu0 0.0
    %603 = vmatprep.subr.mxu0 0.0
    %604 = vmatpush1.xpose.msra.mxu0 0.0
    %605 = vmatprep.subr.mxu0 0.0
    %606 = vmatpush1.xpose.msra.mxu0 0.0
    %607 = vmatprep.subr.mxu0 0.0
    %608 = vmatpush1.xpose.msra.mxu0 0.0
    %609 = vmatprep.subr.mxu0 0.0
    %610 = vmatpush1.xpose.msra.mxu0 0.0
    %611 = vmatprep.subr.mxu0 0.0
    %612 = vmatpush1.xpose.msra.mxu0 0.0
    %613 = vmatprep.subr.mxu0 0.0
    %614 = vmatpush1.xpose.msra.mxu0 0.0
    %615 = vmatprep.subr.mxu0 0.0
    %616 = vmatpush1.xpose.msra.mxu0 0.0
    %617 = vmatprep.subr.mxu0 0.0
    %618 = vmatpush1.xpose.msra.mxu0 0.0
    %619 = vmatprep.subr.mxu0 0.0
    %620 = vmatpush1.xpose.msra.mxu0 0.0
    %621 = vmatprep.subr.mxu0 0.0
    %622 = vmatpush1.xpose.msra.mxu0 0.0
    %623 = vmatprep.subr.mxu0 0.0
    %624 = vmatpush1.xpose.msra.mxu0 0.0
    %625 = vmatprep.subr.mxu0 0.0
    %626 = vmatpush1.xpose.msra.mxu0 0.0
    %627 = vmatprep.subr.mxu0 0.0
    %628 = vmatpush1.xpose.msra.mxu0 0.0
    %629 = vmatprep.subr.mxu0 0.0
    %630 = vmatpush1.xpose.msra.mxu0 0.0
    %631 = vmatprep.subr.mxu0 0.0
    %632 = vmatpush1.xpose.msra.mxu0 0.0
    %633 = vmatprep.subr.mxu0 0.0
    %634 = vmatpush1.xpose.msra.mxu0 0.0
    %635 = vmatprep.subr.mxu0 0.0
    %636 = vmatpush1.xpose.msra.mxu0 0.0
    %637 = vmatprep.subr.mxu0 0.0
    %638 = vmatpush1.xpose.msra.mxu0 0.0
    %639 = vmatprep.subr.mxu0 0.0
    %640 = vmatpush1.xpose.msra.mxu0 0.0
    %641 = vmatprep.subr.mxu0 0.0
    %642 = vmatpush1.xpose.msra.mxu0 0.0
    %643 = vmatprep.subr.mxu0 0.0
    %644 = vmatpush1.xpose.msra.mxu0 0.0
    %645 = vmatprep.subr.mxu0 0.0
    %646 = vmatpush1.xpose.msra.mxu0 0.0
    %647 = vmatprep.subr.mxu0 0.0
    %648 = vmatpush1.xpose.msra.mxu0 0.0
    %649 = vmatprep.subr.mxu0 0.0
    %650 = vmatpush1.xpose.msra.mxu0 0.0
    %651 = vmatprep.subr.mxu0 0.0
    %652 = vmatpush1.xpose.msra.mxu0 0.0
    %653 = vmatprep.subr.mxu0 0.0
    %654 = vmatpush1.xpose.msra.mxu0 0.0
    %655 = vmatprep.subr.mxu0 0.0
    %656 = vmatpush1.xpose.msra.mxu0 0.0
    %657 = vmatprep.subr.mxu0 0.0
    %658 = vmatpush1.xpose.msra.mxu0 0.0
    %659 = vmatprep.subr.mxu0 0.0
    %660 = vmatpush1.xpose.msra.mxu0 0.0
    %661 = vmatprep.mubr.f32.mxu0 0.0
    %662 = vmatmul.mubr.f32.gmra.mrb[0].mxu0 %v589
    %v663 = vpop.f32.mrb[0].mxu0
    %v664 = vadd.f32 %v61, %v663
    %v665 = vpop.f32.mrb[0].mxu0
    %666 = vmatprep.mubr.f32.mxu0 0.0
    %667 = vmatmul.mubr.f32.gmra.mrb[0].mxu0 %v591
    %v668 = vpop.f32.mrb[0].mxu0
    %v669 = vadd.f32 %v62, %v668
    %v670 = vpop.f32.mrb[0].mxu0
    %671 = vdwg.mxu0
    %v672 = vsel %vm271, %v664, -inf
    %673 = vmax.xlane.f32.xlu0 %v672
    %v674 = vpop.xlane.xlu0 %673
    %v675 = vsel %vm271, %v669, -inf
    %676 = vmax.xlane.f32.xlu0 %v675
    %v677 = vpop.xlane.xlu0 %676
    %v678 = vsub.f32 %v664, %v674
    %v679 = vsub.f32 %v669, %v677
    %v680 = vmul.f32 %v678, 1.442695
    %v681 = vpow.pop %v680
    %v682 = vmul.f32 %v679, 1.442695
    %v683 = vpow.pop %v682
    %v684 = vsel %vm271, %v681, 0.0
    %685 = vadd.xlane.f32.xlu0 %v684
    %v686 = vpop.xlane.xlu0 %685
    %v687 = vsel %vm271, %v683, 0.0
    %688 = vadd.xlane.f32.xlu0 %v687
    %v689 = vpop.xlane.xlu0 %688
    %v690 = vrcp.pop %v686
    %v691 = vrcp.pop %v689
    %692 = vrot.lane.b32.xlu0 %v173, 48
    %v693 = vpop.permute.xlu0 %692
    %694 = vrot.lane.b32.xlu0 %v178, 48
    %v695 = vpop.permute.xlu0 %694
    %v699 = vsel %vm271, %v681, 0
    %v702 = vsel %vm271, %v683, 0
    %704 = vmatprep.subr.mxu0 0.0
    %705 = vmatpush1.msra.mxu0 %v693
    %706 = vmatprep.subr.mxu0 0.0
    %707 = vmatpush1.msra.mxu0 %v695
    %708 = vmatprep.subr.mxu0 0.0
    %709 = vmatpush1.msra.mxu0 0.0
    %710 = vmatprep.subr.mxu0 0.0
    %711 = vmatpush1.msra.mxu0 0.0
    %712 = vmatprep.subr.mxu0 0.0
    %713 = vmatpush1.msra.mxu0 0.0
    %714 = vmatprep.subr.mxu0 0.0
    %715 = vmatpush1.msra.mxu0 0.0
    %716 = vmatprep.subr.mxu0 0.0
    %717 = vmatpush1.msra.mxu0 0.0
    %718 = vmatprep.subr.mxu0 0.0
    %719 = vmatpush1.msra.mxu0 0.0
    %720 = vmatprep.subr.mxu0 0.0
    %721 = vmatpush1.msra.mxu0 0.0
    %722 = vmatprep.subr.mxu0 0.0
    %723 = vmatpush1.msra.mxu0 0.0
    %724 = vmatprep.subr.mxu0 0.0
    %725 = vmatpush1.msra.mxu0 0.0
    %726 = vmatprep.subr.mxu0 0.0
    %727 = vmatpush1.msra.mxu0 0.0
    %728 = vmatprep.subr.mxu0 0.0
    %729 = vmatpush1.msra.mxu0 0.0
    %730 = vmatprep.subr.mxu0 0.0
    %731 = vmatpush1.msra.mxu0 0.0
    %732 = vmatprep.subr.mxu0 0.0
    %733 = vmatpush1.msra.mxu0 0.0
    %734 = vmatprep.subr.mxu0 0.0
    %735 = vmatpush1.msra.mxu0 0.0
    %736 = vmatprep.subr.mxu0 0.0
    %737 = vmatpush1.msra.mxu0 0.0
    %738 = vmatprep.subr.mxu0 0.0
    %739 = vmatpush1.msra.mxu0 0.0
    %740 = vmatprep.subr.mxu0 0.0
    %741 = vmatpush1.msra.mxu0 0.0
    %742 = vmatprep.subr.mxu0 0.0
    %743 = vmatpush1.msra.mxu0 0.0
    %744 = vmatprep.subr.mxu0 0.0
    %745 = vmatpush1.msra.mxu0 0.0
    %746 = vmatprep.subr.mxu0 0.0
    %747 = vmatpush1.msra.mxu0 0.0
    %748 = vmatprep.subr.mxu0 0.0
    %749 = vmatpush1.msra.mxu0 0.0
    %750 = vmatprep.subr.mxu0 0.0
    %751 = vmatpush1.msra.mxu0 0.0
    %752 = vmatprep.subr.mxu0 0.0
    %753 = vmatpush1.msra.mxu0 0.0
    %754 = vmatprep.subr.mxu0 0.0
    %755 = vmatpush1.msra.mxu0 0.0
    %756 = vmatprep.subr.mxu0 0.0
    %757 = vmatpush1.msra.mxu0 0.0
    %758 = vmatprep.subr.mxu0 0.0
    %759 = vmatpush1.msra.mxu0 0.0
    %760 = vmatprep.subr.mxu0 0.0
    %761 = vmatpush1.msra.mxu0 0.0
    %762 = vmatprep.subr.mxu0 0.0
    %763 = vmatpush1.msra.mxu0 0.0
    %764 = vmatprep.subr.mxu0 0.0
    %765 = vmatpush1.msra.mxu0 0.0
    %766 = vmatprep.subr.mxu0 0.0
    %767 = vmatpush1.msra.mxu0 0.0
    %768 = vmatprep.mubr.f32.mxu0 0.0
    %769 = vmatmul.mubr.f32.gmra.mrb[0].mxu0 %v699
    %v770 = vpop.f32.mrb[0].mxu0
    %v771 = vadd.f32 0.0, %v770
    %v772 = vpop.f32.mrb[0].mxu0
    %773 = vmatprep.mubr.f32.mxu0 0.0
    %774 = vmatmul.mubr.f32.gmra.mrb[0].mxu0 %v702
    %v775 = vpop.f32.mrb[0].mxu0
    %v776 = vadd.f32 0.0, %v775
    %v777 = vpop.f32.mrb[0].mxu0
    %778 = vdwg.mxu0
    %v779 = vmul.f32 %v771, %v690
    %v780 = vmul.f32 %v776, %v691
    %781 = vrot.lane.b32.xlu0 %v173, 104
    %v782 = vpop.permute.xlu0 %781
    %783 = vrot.lane.b32.xlu0 %v178, 104
    %v784 = vpop.permute.xlu0 %783
    %785 = vrot.lane.b32.xlu0 %v173, 72
    %v786 = vpop.permute.xlu0 %785
    %787 = vrot.lane.b32.xlu0 %v178, 72
    %v788 = vpop.permute.xlu0 %787
    %v789 = vsel %vm187, %v782, 0
    %v791 = vsel %vm187, %v784, 0
    %v793 = vsel %vm187, %v786, 0
    %v795 = vsel %vm187, %v788, 0
    %797 = vmatprep.subr.mxu0 0.0
    %798 = vmatpush1.xpose.msra.mxu0 %v793
    %799 = vmatprep.subr.mxu0 0.0
    %800 = vmatpush1.xpose.msra.mxu0 %v795
    %801 = vmatprep.subr.mxu0 0.0
    %802 = vmatpush1.xpose.msra.mxu0 0.0
    %803 = vmatprep.subr.mxu0 0.0
    %804 = vmatpush1.xpose.msra.mxu0 0.0
    %805 = vmatprep.subr.mxu0 0.0
    %806 = vmatpush1.xpose.msra.mxu0 0.0
    %807 = vmatprep.subr.mxu0 0.0
    %808 = vmatpush1.xpose.msra.mxu0 0.0
    %809 = vmatprep.subr.mxu0 0.0
    %810 = vmatpush1.xpose.msra.mxu0 0.0
    %811 = vmatprep.subr.mxu0 0.0
    %812 = vmatpush1.xpose.msra.mxu0 0.0
    %813 = vmatprep.subr.mxu0 0.0
    %814 = vmatpush1.xpose.msra.mxu0 0.0
    %815 = vmatprep.subr.mxu0 0.0
    %816 = vmatpush1.xpose.msra.mxu0 0.0
    %817 = vmatprep.subr.mxu0 0.0
    %818 = vmatpush1.xpose.msra.mxu0 0.0
    %819 = vmatprep.subr.mxu0 0.0
    %820 = vmatpush1.xpose.msra.mxu0 0.0
    %821 = vmatprep.subr.mxu0 0.0
    %822 = vmatpush1.xpose.msra.mxu0 0.0
    %823 = vmatprep.subr.mxu0 0.0
    %824 = vmatpush1.xpose.msra.mxu0 0.0
    %825 = vmatprep.subr.mxu0 0.0
    %826 = vmatpush1.xpose.msra.mxu0 0.0
    %827 = vmatprep.subr.mxu0 0.0
    %828 = vmatpush1.xpose.msra.mxu0 0.0
    %829 = vmatprep.subr.mxu0 0.0
    %830 = vmatpush1.xpose.msra.mxu0 0.0
    %831 = vmatprep.subr.mxu0 0.0
    %832 = vmatpush1.xpose.msra.mxu0 0.0
    %833 = vmatprep.subr.mxu0 0.0
    %834 = vmatpush1.xpose.msra.mxu0 0.0
    %835 = vmatprep.subr.mxu0 0.0
    %836 = vmatpush1.xpose.msra.mxu0 0.0
    %837 = vmatprep.subr.mxu0 0.0
    %838 = vmatpush1.xpose.msra.mxu0 0.0
    %839 = vmatprep.subr.mxu0 0.0
    %840 = vmatpush1.xpose.msra.mxu0 0.0
    %841 = vmatprep.subr.mxu0 0.0
    %842 = vmatpush1.xpose.msra.mxu0 0.0
    %843 = vmatprep.subr.mxu0 0.0
    %844 = vmatpush1.xpose.msra.mxu0 0.0
    %845 = vmatprep.subr.mxu0 0.0
    %846 = vmatpush1.xpose.msra.mxu0 0.0
    %847 = vmatprep.subr.mxu0 0.0
    %848 = vmatpush1.xpose.msra.mxu0 0.0
    %849 = vmatprep.subr.mxu0 0.0
    %850 = vmatpush1.xpose.msra.mxu0 0.0
    %851 = vmatprep.subr.mxu0 0.0
    %852 = vmatpush1.xpose.msra.mxu0 0.0
    %853 = vmatprep.subr.mxu0 0.0
    %854 = vmatpush1.xpose.msra.mxu0 0.0
    %855 = vmatprep.subr.mxu0 0.0
    %856 = vmatpush1.xpose.msra.mxu0 0.0
    %857 = vmatprep.subr.mxu0 0.0
    %858 = vmatpush1.xpose.msra.mxu0 0.0
    %859 = vmatprep.subr.mxu0 0.0
    %860 = vmatpush1.xpose.msra.mxu0 0.0
    %861 = vmatprep.mubr.f32.mxu0 0.0
    %862 = vmatmul.mubr.f32.gmra.mrb[0].mxu0 %v789
    %v863 = vpop.f32.mrb[0].mxu0
    %v864 = vadd.f32 %v61, %v863
    %v865 = vpop.f32.mrb[0].mxu0
    %866 = vmatprep.mubr.f32.mxu0 0.0
    %867 = vmatmul.mubr.f32.gmra.mrb[0].mxu0 %v791
    %v868 = vpop.f32.mrb[0].mxu0
    %v869 = vadd.f32 %v62, %v868
    %v870 = vpop.f32.mrb[0].mxu0
    %871 = vdwg.mxu0
    %v872 = vsel %vm271, %v864, -inf
    %873 = vmax.xlane.f32.xlu0 %v872
    %v874 = vpop.xlane.xlu0 %873
    %v875 = vsel %vm271, %v869, -inf
    %876 = vmax.xlane.f32.xlu0 %v875
    %v877 = vpop.xlane.xlu0 %876
    %v878 = vsub.f32 %v864, %v874
    %v879 = vsub.f32 %v869, %v877
    %v880 = vmul.f32 %v878, 1.442695
    %v881 = vpow.pop %v880
    %v882 = vmul.f32 %v879, 1.442695
    %v883 = vpow.pop %v882
    %v884 = vsel %vm271, %v881, 0.0
    %885 = vadd.xlane.f32.xlu0 %v884
    %v886 = vpop.xlane.xlu0 %885
    %v887 = vsel %vm271, %v883, 0.0
    %888 = vadd.xlane.f32.xlu0 %v887
    %v889 = vpop.xlane.xlu0 %888
    %v890 = vrcp.pop %v886
    %v891 = vrcp.pop %v889
    %892 = vrot.lane.b32.xlu0 %v173, 40
    %v893 = vpop.permute.xlu0 %892
    %894 = vrot.lane.b32.xlu0 %v178, 40
    %v895 = vpop.permute.xlu0 %894
    %v899 = vsel %vm271, %v881, 0
    %v902 = vsel %vm271, %v883, 0
    %904 = vmatprep.subr.mxu0 0.0
    %905 = vmatpush1.msra.mxu0 %v893
    %906 = vmatprep.subr.mxu0 0.0
    %907 = vmatpush1.msra.mxu0 %v895
    %908 = vmatprep.subr.mxu0 0.0
    %909 = vmatpush1.msra.mxu0 0.0
    %910 = vmatprep.subr.mxu0 0.0
    %911 = vmatpush1.msra.mxu0 0.0
    %912 = vmatprep.subr.mxu0 0.0
    %913 = vmatpush1.msra.mxu0 0.0
    %914 = vmatprep.subr.mxu0 0.0
    %915 = vmatpush1.msra.mxu0 0.0
    %916 = vmatprep.subr.mxu0 0.0
    %917 = vmatpush1.msra.mxu0 0.0
    %918 = vmatprep.subr.mxu0 0.0
    %919 = vmatpush1.msra.mxu0 0.0
    %920 = vmatprep.subr.mxu0 0.0
    %921 = vmatpush1.msra.mxu0 0.0
    %922 = vmatprep.subr.mxu0 0.0
    %923 = vmatpush1.msra.mxu0 0.0
    %924 = vmatprep.subr.mxu0 0.0
    %925 = vmatpush1.msra.mxu0 0.0
    %926 = vmatprep.subr.mxu0 0.0
    %927 = vmatpush1.msra.mxu0 0.0
    %928 = vmatprep.subr.mxu0 0.0
    %929 = vmatpush1.msra.mxu0 0.0
    %930 = vmatprep.subr.mxu0 0.0
    %931 = vmatpush1.msra.mxu0 0.0
    %932 = vmatprep.subr.mxu0 0.0
    %933 = vmatpush1.msra.mxu0 0.0
    %934 = vmatprep.subr.mxu0 0.0
    %935 = vmatpush1.msra.mxu0 0.0
    %936 = vmatprep.subr.mxu0 0.0
    %937 = vmatpush1.msra.mxu0 0.0
    %938 = vmatprep.subr.mxu0 0.0
    %939 = vmatpush1.msra.mxu0 0.0
    %940 = vmatprep.subr.mxu0 0.0
    %941 = vmatpush1.msra.mxu0 0.0
    %942 = vmatprep.subr.mxu0 0.0
    %943 = vmatpush1.msra.mxu0 0.0
    %944 = vmatprep.subr.mxu0 0.0
    %945 = vmatpush1.msra.mxu0 0.0
    %946 = vmatprep.subr.mxu0 0.0
    %947 = vmatpush1.msra.mxu0 0.0
    %948 = vmatprep.subr.mxu0 0.0
    %949 = vmatpush1.msra.mxu0 0.0
    %950 = vmatprep.subr.mxu0 0.0
    %951 = vmatpush1.msra.mxu0 0.0
    %952 = vmatprep.subr.mxu0 0.0
    %953 = vmatpush1.msra.mxu0 0.0
    %954 = vmatprep.subr.mxu0 0.0
    %955 = vmatpush1.msra.mxu0 0.0
    %956 = vmatprep.subr.mxu0 0.0
    %957 = vmatpush1.msra.mxu0 0.0
    %958 = vmatprep.subr.mxu0 0.0
    %959 = vmatpush1.msra.mxu0 0.0
    %960 = vmatprep.subr.mxu0 0.0
    %961 = vmatpush1.msra.mxu0 0.0
    %962 = vmatprep.subr.mxu0 0.0
    %963 = vmatpush1.msra.mxu0 0.0
    %964 = vmatprep.subr.mxu0 0.0
    %965 = vmatpush1.msra.mxu0 0.0
    %966 = vmatprep.subr.mxu0 0.0
    %967 = vmatpush1.msra.mxu0 0.0
    %968 = vmatprep.mubr.f32.mxu0 0.0
    %969 = vmatmul.mubr.f32.gmra.mrb[0].mxu0 %v899
    %v970 = vpop.f32.mrb[0].mxu0
    %v971 = vadd.f32 0.0, %v970
    %v972 = vpop.f32.mrb[0].mxu0
    %973 = vmatprep.mubr.f32.mxu0 0.0
    %974 = vmatmul.mubr.f32.gmra.mrb[0].mxu0 %v902
    %v975 = vpop.f32.mrb[0].mxu0
    %v976 = vadd.f32 0.0, %v975
    %v977 = vpop.f32.mrb[0].mxu0
    %978 = vdwg.mxu0
    %v979 = vmul.f32 %v971, %v890
    %v980 = vmul.f32 %v976, %v891
    %983 = vrot.lane.b32.xlu0 %v579, 8
    %v984 = vpop.permute.xlu0 %983
    %985 = vrot.lane.b32.xlu0 %v580, 8
    %v986 = vpop.permute.xlu0 %985
    %991 = vrot.lane.b32.xlu0 %v779, 16
    %v992 = vpop.permute.xlu0 %991
    %993 = vrot.lane.b32.xlu0 %v780, 16
    %v994 = vpop.permute.xlu0 %993
    %999 = vrot.lane.b32.xlu0 %v979, 24
    %v1000 = vpop.permute.xlu0 %999
    %1001 = vrot.lane.b32.xlu0 %v980, 24
    %v1002 = vpop.permute.xlu0 %1001
    %v1005 = vsel %vm187, %v379, %v984
    %v1006 = vsel %vm187, %v380, %v986
    %v1007 = vsel %vm271, %v1005, %v992
    %v1008 = vsel %vm271, %v1006, %v994
    %vm1009 = vcmask 195584
    %v1010 = vsel %vm1009, %v1007, %v1000
    %v1011 = vsel %vm1009, %v1008, %v1002
    %v1012 = vld [vmem:[#allocation7 + $0x20] sm:$0xff]
    %v1013 = vld [vmem:[#allocation7 + $0x28] sm:$0xff]
    %v1014 = vld [vmem:[#allocation7 + $0x30] sm:$0xff]
    %v1015 = vld [vmem:[#allocation7 + $0x38] sm:$0xff]
    %v1016 = vld [vmem:[%s3 + $0x1] sm:$0x1]
    %v1017 = vlaneseq
    %v1018 = vshrl.u32 %v1017, 7
    %v1019 = vsub.s32 0, %v1018
    %v1020 = vrot.slane %v1016, %v1019
    %v1022 = vsel %vm63, %v1010, 0
    %v1025 = vsel %vm63, %v1011, 0
    %1027 = vmatprep.subr.mxu0 0.0
    %1028 = vmatpush1.msra.mxu0 %v1012
    %1029 = vmatprep.subr.mxu0 0.0
    %1030 = vmatpush1.msra.mxu0 %v1013
    %1031 = vmatprep.subr.mxu0 0.0
    %1032 = vmatpush1.msra.mxu0 %v1014
    %1033 = vmatprep.subr.mxu0 0.0
    %1034 = vmatpush1.msra.mxu0 %v1015
    %1035 = vmatprep.subr.mxu0 0.0
    %1036 = vmatpush1.msra.mxu0 0.0
    %1037 = vmatprep.subr.mxu0 0.0
    %1038 = vmatpush1.msra.mxu0 0.0
    %1039 = vmatprep.subr.mxu0 0.0
    %1040 = vmatpush1.msra.mxu0 0.0
    %1041 = vmatprep.subr.mxu0 0.0
    %1042 = vmatpush1.msra.mxu0 0.0
    %1043 = vmatprep.subr.mxu0 0.0
    %1044 = vmatpush1.msra.mxu0 0.0
    %1045 = vmatprep.subr.mxu0 0.0
    %1046 = vmatpush1.msra.mxu0 0.0
    %1047 = vmatprep.subr.mxu0 0.0
    %1048 = vmatpush1.msra.mxu0 0.0
    %1049 = vmatprep.subr.mxu0 0.0
    %1050 = vmatpush1.msra.mxu0 0.0
    %1051 = vmatprep.subr.mxu0 0.0
    %1052 = vmatpush1.msra.mxu0 0.0
    %1053 = vmatprep.subr.mxu0 0.0
    %1054 = vmatpush1.msra.mxu0 0.0
    %1055 = vmatprep.subr.mxu0 0.0
    %1056 = vmatpush1.msra.mxu0 0.0
    %1057 = vmatprep.subr.mxu0 0.0
    %1058 = vmatpush1.msra.mxu0 0.0
    %1059 = vmatprep.subr.mxu0 0.0
    %1060 = vmatpush1.msra.mxu0 0.0
    %1061 = vmatprep.subr.mxu0 0.0
    %1062 = vmatpush1.msra.mxu0 0.0
    %1063 = vmatprep.subr.mxu0 0.0
    %1064 = vmatpush1.msra.mxu0 0.0
    %1065 = vmatprep.subr.mxu0 0.0
    %1066 = vmatpush1.msra.mxu0 0.0
    %1067 = vmatprep.subr.mxu0 0.0
    %1068 = vmatpush1.msra.mxu0 0.0
    %1069 = vmatprep.subr.mxu0 0.0
    %1070 = vmatpush1.msra.mxu0 0.0
    %1071 = vmatprep.subr.mxu0 0.0
    %1072 = vmatpush1.msra.mxu0 0.0
    %1073 = vmatprep.subr.mxu0 0.0
    %1074 = vmatpush1.msra.mxu0 0.0
    %1075 = vmatprep.subr.mxu0 0.0
    %1076 = vmatpush1.msra.mxu0 0.0
    %1077 = vmatprep.subr.mxu0 0.0
    %1078 = vmatpush1.msra.mxu0 0.0
    %1079 = vmatprep.subr.mxu0 0.0
    %1080 = vmatpush1.msra.mxu0 0.0
    %1081 = vmatprep.subr.mxu0 0.0
    %1082 = vmatpush1.msra.mxu0 0.0
    %1083 = vmatprep.subr.mxu0 0.0
    %1084 = vmatpush1.msra.mxu0 0.0
    %1085 = vmatprep.subr.mxu0 0.0
    %1086 = vmatpush1.msra.mxu0 0.0
    %1087 = vmatprep.subr.mxu0 0.0
    %1088 = vmatpush1.msra.mxu0 0.0
    %1089 = vmatprep.subr.mxu0 0.0
    %1090 = vmatpush1.msra.mxu0 0.0
    %1091 = vmatprep.mubr.f32.mxu0 0.0
    %1092 = vmatmul.mubr.f32.gmra.mrb[0].mxu0 %v1022
    %v1093 = vpop.f32.mrb[0].mxu0
    %v1094 = vadd.f32 %v1020, %v1093
    %v1095 = vpop.f32.mrb[0].mxu0
    %1096 = vmatprep.mubr.f32.mxu0 0.0
    %1097 = vmatmul.mubr.f32.gmra.mrb[0].mxu0 %v1025
    %v1098 = vpop.f32.mrb[0].mxu0
    %v1099 = vadd.f32 %v1020, %v1098
    %v1100 = vpop.f32.mrb[0].mxu0
    %1101 = vdwg.mxu0
    %v1102 = vadd.f32 %v59, %v1094
    %v1103 = vadd.f32 %v60, %v1099
    %v1104 = vsel %vm63, %v1102, 0.0
    %1105 = vadd.xlane.f32.xlu0 %v1104
    %v1106 = vpop.xlane.xlu0 %1105
    %v1107 = vsel %vm63, %v1103, 0.0
    %1108 = vadd.xlane.f32.xlu0 %v1107
    %v1109 = vpop.xlane.xlu0 %1108
    %v1110 = vmul.f32 %v1106, %v70
    %v1111 = vmul.f32 %v1109, %v70
    %v1112 = vsub.f32 %v1102, %v1110
    %v1113 = vsub.f32 %v1103, %v1111
    %v1114 = vmul.f32 %v1112, %v1112
    %v1115 = vmul.f32 %v1113, %v1113
    %v1116 = vsel %vm63, %v1114, 0.0
    %1117 = vadd.xlane.f32.xlu0 %v1116
    %v1118 = vpop.xlane.xlu0 %1117
    %v1119 = vsel %vm63, %v1115, 0.0
    %1120 = vadd.xlane.f32.xlu0 %v1119
    %v1121 = vpop.xlane.xlu0 %1120
    %v1122 = vmul.f32 %v1118, 0.032258064
    %v1123 = vmul.f32 %v1121, 0.032258064
    %v1124 = vadd.f32 %v1122, 1e-06
    %v1125 = vadd.f32 %v1123, 1e-06
    %v1126 = vrsqrt.pop %v1124
    %v1127 = vrsqrt.pop %v1125
    %v1128 = vmul.f32 %v1112, %v1126
    %v1129 = vmul.f32 %v1113, %v1127
    %v1130 = vld [vmem:[#allocation7 + $0x40] sm:$0xff]
    %v1131 = vld [vmem:[#allocation7 + $0x48] sm:$0xff]
    %v1132 = vld [vmem:[#allocation7 + $0x50] sm:$0xff]
    %v1133 = vld [vmem:[#allocation7 + $0x58] sm:$0xff]
    %v1134 = vld [vmem:[%s3 + $0x2] sm:$0x1]
    %v1135 = vlaneseq
    %v1136 = vshrl.u32 %v1135, 7
    %v1137 = vsub.s32 0, %v1136
    %v1138 = vrot.slane %v1134, %v1137
    %v1140 = vsel %vm63, %v1128, 0
    %v1143 = vsel %vm63, %v1129, 0
    %1145 = vmatprep.subr.mxu0 0.0
    %1146 = vmatpush1.msra.mxu0 %v1130
    %1147 = vmatprep.subr.mxu0 0.0
    %1148 = vmatpush1.msra.mxu0 %v1131
    %1149 = vmatprep.subr.mxu0 0.0
    %1150 = vmatpush1.msra.mxu0 %v1132
    %1151 = vmatprep.subr.mxu0 0.0
    %1152 = vmatpush1.msra.mxu0 %v1133
    %1153 = vmatprep.subr.mxu0 0.0
    %1154 = vmatpush1.msra.mxu0 0.0
    %1155 = vmatprep.subr.mxu0 0.0
    %1156 = vmatpush1.msra.mxu0 0.0
    %1157 = vmatprep.subr.mxu0 0.0
    %1158 = vmatpush1.msra.mxu0 0.0
    %1159 = vmatprep.subr.mxu0 0.0
    %1160 = vmatpush1.msra.mxu0 0.0
    %1161 = vmatprep.subr.mxu0 0.0
    %1162 = vmatpush1.msra.mxu0 0.0
    %1163 = vmatprep.subr.mxu0 0.0
    %1164 = vmatpush1.msra.mxu0 0.0
    %1165 = vmatprep.subr.mxu0 0.0
    %1166 = vmatpush1.msra.mxu0 0.0
    %1167 = vmatprep.subr.mxu0 0.0
    %1168 = vmatpush1.msra.mxu0 0.0
    %1169 = vmatprep.subr.mxu0 0.0
    %1170 = vmatpush1.msra.mxu0 0.0
    %1171 = vmatprep.subr.mxu0 0.0
    %1172 = vmatpush1.msra.mxu0 0.0
    %1173 = vmatprep.subr.mxu0 0.0
    %1174 = vmatpush1.msra.mxu0 0.0
    %1175 = vmatprep.subr.mxu0 0.0
    %1176 = vmatpush1.msra.mxu0 0.0
    %1177 = vmatprep.subr.mxu0 0.0
    %1178 = vmatpush1.msra.mxu0 0.0
    %1179 = vmatprep.subr.mxu0 0.0
    %1180 = vmatpush1.msra.mxu0 0.0
    %1181 = vmatprep.subr.mxu0 0.0
    %1182 = vmatpush1.msra.mxu0 0.0
    %1183 = vmatprep.subr.mxu0 0.0
    %1184 = vmatpush1.msra.mxu0 0.0
    %1185 = vmatprep.subr.mxu0 0.0
    %1186 = vmatpush1.msra.mxu0 0.0
    %1187 = vmatprep.subr.mxu0 0.0
    %1188 = vmatpush1.msra.mxu0 0.0
    %1189 = vmatprep.subr.mxu0 0.0
    %1190 = vmatpush1.msra.mxu0 0.0
    %1191 = vmatprep.subr.mxu0 0.0
    %1192 = vmatpush1.msra.mxu0 0.0
    %1193 = vmatprep.subr.mxu0 0.0
    %1194 = vmatpush1.msra.mxu0 0.0
    %1195 = vmatprep.subr.mxu0 0.0
    %1196 = vmatpush1.msra.mxu0 0.0
    %1197 = vmatprep.subr.mxu0 0.0
    %1198 = vmatpush1.msra.mxu0 0.0
    %1199 = vmatprep.subr.mxu0 0.0
    %1200 = vmatpush1.msra.mxu0 0.0
    %1201 = vmatprep.subr.mxu0 0.0
    %1202 = vmatpush1.msra.mxu0 0.0
    %1203 = vmatprep.subr.mxu0 0.0
    %1204 = vmatpush1.msra.mxu0 0.0
    %1205 = vmatprep.subr.mxu0 0.0
    %1206 = vmatpush1.msra.mxu0 0.0
    %1207 = vmatprep.subr.mxu0 0.0
    %1208 = vmatpush1.msra.mxu0 0.0
    %1209 = vmatprep.mubr.f32.mxu0 0.0
    %1210 = vmatmul.mubr.f32.gmra.mrb[0].mxu0 %v1140
    %v1211 = vpop.f32.mrb[0].mxu0
    %v1212 = vadd.f32 %v1138, %v1211
    %v1213 = vpop.f32.mrb[0].mxu0
    %1214 = vmatprep.mubr.f32.mxu0 0.0
    %1215 = vmatmul.mubr.f32.gmra.mrb[0].mxu0 %v1143
    %v1216 = vpop.f32.mrb[0].mxu0
    %v1217 = vadd.f32 %v1138, %v1216
    %v1218 = vpop.f32.mrb[0].mxu0
    %1219 = vdwg.mxu0
    %v1220 = vmax.f32 %v1212, 0.0
    %v1221 = vmax.f32 %v1217, 0.0
    %v1222 = vld [vmem:[#allocation7 + $0x60] sm:$0xff]
    %v1223 = vld [vmem:[#allocation7 + $0x68] sm:$0xff]
    %v1224 = vld [vmem:[#allocation7 + $0x70] sm:$0xff]
    %v1225 = vld [vmem:[#allocation7 + $0x78] sm:$0xff]
    %v1226 = vld [vmem:[#allocation7 + $0x80] sm:$0xff]
    %v1227 = vld [vmem:[#allocation7 + $0x88] sm:$0xff]
    %v1228 = vld [vmem:[#allocation7 + $0x90] sm:$0xff]
    %v1229 = vld [vmem:[#allocation7 + $0x98] sm:$0xff]
    %v1230 = vld [vmem:[#allocation7 + $0xa0] sm:$0xff]
    %v1231 = vld [vmem:[#allocation7 + $0xa8] sm:$0xff]
    %v1232 = vld [vmem:[#allocation7 + $0xb0] sm:$0xff]
    %v1233 = vld [vmem:[#allocation7 + $0xb8] sm:$0xff]
    %v1234 = vld [vmem:[#allocation7 + $0xc0] sm:$0xff]
    %v1235 = vld [vmem:[#allocation7 + $0xc8] sm:$0xff]
    %v1236 = vld [vmem:[#allocation7 + $0xd0] sm:$0xff]
    %v1237 = vld [vmem:[#allocation7 + $0xd8] sm:$0xff]
    %v1238 = vld [vmem:[%s3 + $0x3] sm:$0x1]
    %v1239 = vlaneseq
    %v1240 = vshrl.u32 %v1239, 7
    %v1241 = vsub.s32 0, %v1240
    %v1242 = vrot.slane %v1238, %v1241
    %1243 = vmatprep.subr.mxu0 0.0
    %1244 = vmatpush1.msra.mxu0 %v1222
    %1245 = vmatprep.subr.mxu0 0.0
    %1246 = vmatpush1.msra.mxu0 %v1223
    %1247 = vmatprep.subr.mxu0 0.0
    %1248 = vmatpush1.msra.mxu0 %v1224
    %1249 = vmatprep.subr.mxu0 0.0
    %1250 = vmatpush1.msra.mxu0 %v1225
    %1251 = vmatprep.subr.mxu0 0.0
    %1252 = vmatpush1.msra.mxu0 %v1226
    %1253 = vmatprep.subr.mxu0 0.0
    %1254 = vmatpush1.msra.mxu0 %v1227
    %1255 = vmatprep.subr.mxu0 0.0
    %1256 = vmatpush1.msra.mxu0 %v1228
    %1257 = vmatprep.subr.mxu0 0.0
    %1258 = vmatpush1.msra.mxu0 %v1229
    %1259 = vmatprep.subr.mxu0 0.0
    %1260 = vmatpush1.msra.mxu0 %v1230
    %1261 = vmatprep.subr.mxu0 0.0
    %1262 = vmatpush1.msra.mxu0 %v1231
    %1263 = vmatprep.subr.mxu0 0.0
    %1264 = vmatpush1.msra.mxu0 %v1232
    %1265 = vmatprep.subr.mxu0 0.0
    %1266 = vmatpush1.msra.mxu0 %v1233
    %1267 = vmatprep.subr.mxu0 0.0
    %1268 = vmatpush1.msra.mxu0 %v1234
    %1269 = vmatprep.subr.mxu0 0.0
    %1270 = vmatpush1.msra.mxu0 %v1235
    %1271 = vmatprep.subr.mxu0 0.0
    %1272 = vmatpush1.msra.mxu0 %v1236
    %1273 = vmatprep.subr.mxu0 0.0
    %1274 = vmatpush1.msra.mxu0 %v1237
    %1275 = vmatprep.subr.mxu0 0.0
    %1276 = vmatpush1.msra.mxu0 0.0
    %1277 = vmatprep.subr.mxu0 0.0
    %1278 = vmatpush1.msra.mxu0 0.0
    %1279 = vmatprep.subr.mxu0 0.0
    %1280 = vmatpush1.msra.mxu0 0.0
    %1281 = vmatprep.subr.mxu0 0.0
    %1282 = vmatpush1.msra.mxu0 0.0
    %1283 = vmatprep.subr.mxu0 0.0
    %1284 = vmatpush1.msra.mxu0 0.0
    %1285 = vmatprep.subr.mxu0 0.0
    %1286 = vmatpush1.msra.mxu0 0.0
    %1287 = vmatprep.subr.mxu0 0.0
    %1288 = vmatpush1.msra.mxu0 0.0
    %1289 = vmatprep.subr.mxu0 0.0
    %1290 = vmatpush1.msra.mxu0 0.0
    %1291 = vmatprep.subr.mxu0 0.0
    %1292 = vmatpush1.msra.mxu0 0.0
    %1293 = vmatprep.subr.mxu0 0.0
    %1294 = vmatpush1.msra.mxu0 0.0
    %1295 = vmatprep.subr.mxu0 0.0
    %1296 = vmatpush1.msra.mxu0 0.0
    %1297 = vmatprep.subr.mxu0 0.0
    %1298 = vmatpush1.msra.mxu0 0.0
    %1299 = vmatprep.subr.mxu0 0.0
    %1300 = vmatpush1.msra.mxu0 0.0
    %1301 = vmatprep.subr.mxu0 0.0
    %1302 = vmatpush1.msra.mxu0 0.0
    %1303 = vmatprep.subr.mxu0 0.0
    %1304 = vmatpush1.msra.mxu0 0.0
    %1305 = vmatprep.subr.mxu0 0.0
    %1306 = vmatpush1.msra.mxu0 0.0
    %1307 = vmatprep.mubr.f32.mxu0 0.0
    %1308 = vmatmul.mubr.f32.gmra.mrb[0].mxu0 %v1220
    %v1309 = vpop.f32.mrb[0].mxu0
    %v1310 = vadd.f32 %v1242, %v1309
    %v1311 = vpop.f32.mrb[0].mxu0
    %1312 = vmatprep.mubr.f32.mxu0 0.0
    %1313 = vmatmul.mubr.f32.gmra.mrb[0].mxu0 %v1221
    %v1314 = vpop.f32.mrb[0].mxu0
    %v1315 = vadd.f32 %v1242, %v1314
    %v1316 = vpop.f32.mrb[0].mxu0
    %1317 = vdwg.mxu0
    %v1318 = vadd.f32 %v1102, %v1310
    %v1319 = vadd.f32 %v1103, %v1315
    %1320 = vst [vmem:[#allocation8] sm:$0xff] %v1318
    %1321 = vst [vmem:[#allocation8 + $0x8] sm:$0xff] %v1319
    // Predicated region
    $region30: #{tpu_custom_call.1} parent=1 // pred_check
      _
    $region31: #{tpu_custom_call.1} parent=1 // pred_check_branch
      %1323 = sbr.rel (0) target = $region33
    $region32: #{tpu_custom_call.1} parent=1 // pred_region
      %s1325 = ssub.s32 256, 256
      %1326 = vsyncadd [#allocation4], %s1325
      %s1327 = sshll.u32 [#allocation8], 4
      %s1328 = int_to_ptr.vmem [resolvable:$true] %s1327
      %1333 = dma.vmem_to_hbm [thread:$0]  %s1328, 256, %s4, [#allocation4], 128, 128, 8
    $region33: #{tpu_custom_call.1} parent=1 // pred_fallthru
      _
    // Predicated region
    $region34: #{tpu_custom_call.1} parent=1 // pred_check
      _
    $region35: #{tpu_custom_call.1} parent=1 // pred_check_branch
      %1335 = sbr.rel (0) target = $region37
    $region36: #{tpu_custom_call.1} parent=1 // pred_region
      %1336 = dma.done [#allocation4], 256
    $region37: #{tpu_custom_call.1} parent=1 // pred_fallthru
      _
    %1337 = vsyncpa [#allocation3], 1
    %1338 = vsyncpa [#allocation6], 1
    %1339 = vsyncpa [#allocation4], 1

</llo_original>
